<compile_context>
chip_gen: v7x
topology: tpu7x:2x2x1
jax: 0.10.0
libtpu: 0.0.40
codegen_flags: <defaults>
</compile_context>

<pallas_src>
import functools
import math

import numpy as np
import jax
import jax.numpy as jnp
from jax.experimental import pallas as pl
from jax.experimental.pallas import tpu as pltpu


def _lane_pad(W):
    # flat zero-padding on each side of the (C, H*W) image; must be >= W+1 so
    # every vertical out-of-range tap of a 3x3 window lands in the zero region,
    # rounded up to a multiple of 128 so the interior store is lane-aligned.
    return ((W + 1 + 127) // 128) * 128


# ---------------- fused Pallas kernel ----------------

def _up_doubleconv_kernel(up_ref, mask_ref, x1_ref, x2_ref,
                          w1_ref, s1_ref, b1_ref,
                          w2_ref, s2_ref, b2_ref,
                          o_ref, pad1_ref, pad2_ref, *, H, W):
    HW = H * W
    LP = _lane_pad(W)
    masks = mask_ref[...]                                   # (9, 1, HW) f32 {0,1}

    # ---- bilinear 2x upsample + UNet diff-pad of x1: one MXU matmul ----
    x1u = jnp.dot(x1_ref[0], up_ref[...],
                  preferred_element_type=jnp.float32)       # (C1, HW) f32

    # ---- implicit cat([x2, x1u], channel) into the zero-padded flat buffer ----
    C2 = x2_ref.shape[1]
    C1 = x1_ref.shape[1]
    pad1_ref[...] = jnp.zeros_like(pad1_ref)
    pad1_ref[0:C2, LP:LP + HW] = x2_ref[0]
    pad1_ref[C2:C2 + C1, LP:LP + HW] = x1u

    def conv3x3_bn_relu(pad_ref, w_ref, s_ref, b_ref):
        # Gather the 9 shifted taps straight out of VMEM (no HBM im2col) and
        # contract all of (tap, cin) in a single matmul with K = 9*Cin.
        taps = []
        for dy in (-1, 0, 1):
            for dx in (-1, 0, 1):
                k = (dy + 1) * 3 + (dx + 1)
                s = LP + dy * W + dx                        # flat tap offset
                taps.append(pad_ref[:, s:s + HW] * masks[k])
        patches = jnp.concatenate(taps, axis=0).astype(jnp.bfloat16)  # (9*Cin, HW)
        acc = jnp.dot(w_ref[...], patches,
                      preferred_element_type=jnp.float32)   # (Cout_blk, HW) f32
        y = acc * s_ref[...] + b_ref[...]                   # folded BN (eval mode)
        return jnp.maximum(y, 0.0)                          # ReLU

    y1 = conv3x3_bn_relu(pad1_ref, w1_ref, s1_ref, b1_ref)  # (Cmid, HW), stays in VMEM

    pad2_ref[...] = jnp.zeros_like(pad2_ref)
    pad2_ref[:, LP:LP + HW] = y1

    # lane-dense (HW = multiple of 128) output store
    o_ref[0] = conv3x3_bn_relu(pad2_ref, w2_ref, s2_ref, b2_ref)


# ---------------- host-side constant builders ----------------

def _interp_matrix(n_in, n_out):
    # bilinear interpolation matrix, align_corners=True
    # (matches nn.Upsample(scale_factor=2, mode='bilinear', align_corners=True)).
    A = np.zeros((n_out, n_in), np.float32)
    if n_in == 1:
        A[:, 0] = 1.0
        return A
    for i in range(n_out):
        pos = i * (n_in - 1) / (n_out - 1)
        lo = min(int(math.floor(pos)), n_in - 2)
        frac = pos - lo
        A[i, lo] += 1.0 - frac
        A[i, lo + 1] += frac
    return A


def _upsample_pad_matrix(H1, W1, H2, W2):
    # (H1*W1, H2*W2): 2x bilinear upsample + UNet zero diff-pad, flattened so
    # the whole resize is one matmul: x1u_flat = x1_flat @ M.T
    ah = np.zeros((H2, H1), np.float32)
    aw = np.zeros((W2, W1), np.float32)
    dY, dX = H2 - 2 * H1, W2 - 2 * W1
    ah[dY // 2: dY // 2 + 2 * H1, :] = _interp_matrix(H1, 2 * H1)
    aw[dX // 2: dX // 2 + 2 * W1, :] = _interp_matrix(W1, 2 * W1)
    return jnp.asarray(np.kron(ah, aw).T)


def _tap_masks(H, W):
    # horizontal-validity masks for the 9 taps (vertical OOB is handled by the
    # flat zero padding around the image in VMEM).
    HW = H * W
    w_idx = np.arange(HW) % W
    ms = []
    for dy in (-1, 0, 1):
        for dx in (-1, 0, 1):
            ms.append(((w_idx + dx >= 0) & (w_idx + dx < W)).astype(np.float32))
    return jnp.asarray(np.stack(ms).reshape(9, 1, HW))


def _pack_conv_weight(w):
    # (3, 3, Cin, Cout) HWIO -> (Cout, 9*Cin) bf16, tap-major (k = ky*3 + kx)
    kh, kw, cin, cout = w.shape
    return jnp.transpose(w, (3, 0, 1, 2)).reshape(cout, kh * kw * cin).astype(jnp.bfloat16)


# ---------------- wrapper ----------------

def up_forward(x1, x2, params):
    # x1: (B, C1, H1, W1), x2: (B, C2, H2, W2); C1 + C2 == in_channels
    B, C1, H1, W1 = x1.shape
    _, C2, H2, W2 = x2.shape
    HW = H2 * W2
    Cin = C1 + C2
    Cmid = params["w1"].shape[-1]
    Cout = params["w2"].shape[-1]
    LP = _lane_pad(W2)

    up = _upsample_pad_matrix(H1, W1, H2, W2)          # (H1*W1, HW) f32
    masks = _tap_masks(H2, W2)                         # (9, 1, HW) f32

    # free metadata reshapes into the flat NC(HW) layout (no transposes)
    x1f = x1.reshape(B, C1, H1 * W1).astype(jnp.float32)
    x2f = x2.reshape(B, C2, HW).astype(jnp.float32)

    # pack weights once (would be pre-packed in a real model)
    w1r = _pack_conv_weight(params["w1"])
    w2r = _pack_conv_weight(params["w2"])
    s1 = params["s1"].reshape(Cmid, 1).astype(jnp.float32)
    b1 = params["b1"].reshape(Cmid, 1).astype(jnp.float32)
    s2 = params["s2"].reshape(Cout, 1).astype(jnp.float32)
    b2 = params["b2"].reshape(Cout, 1).astype(jnp.float32)

    kernel = functools.partial(_up_doubleconv_kernel, H=H2, W=W2)
    out = pl.pallas_call(
        kernel,
        out_shape=jax.ShapeDtypeStruct((B, Cout, HW), jnp.float32),
        grid=(B,),
        in_specs=[
            pl.BlockSpec((H1 * W1, HW), lambda b: (0, 0)),         # upsample matrix
            pl.BlockSpec((9, 1, HW), lambda b: (0, 0, 0)),         # tap masks
            pl.BlockSpec((1, C1, H1 * W1), lambda b: (b, 0, 0)),   # x1 (flat)
            pl.BlockSpec((1, C2, HW), lambda b: (b, 0, 0)),        # x2 (flat)
            pl.BlockSpec((Cmid, 9 * Cin), lambda b: (0, 0)),       # w1 packed (bf16)
            pl.BlockSpec((Cmid, 1), lambda b: (0, 0)),             # BN1 scale
            pl.BlockSpec((Cmid, 1), lambda b: (0, 0)),             # BN1 bias
            pl.BlockSpec((Cout, 9 * Cmid), lambda b: (0, 0)),      # w2 packed (bf16)
            pl.BlockSpec((Cout, 1), lambda b: (0, 0)),             # BN2 scale
            pl.BlockSpec((Cout, 1), lambda b: (0, 0)),             # BN2 bias
        ],
        out_specs=pl.BlockSpec((1, Cout, HW), lambda b: (b, 0, 0)),
        scratch_shapes=[pltpu.VMEM((Cin, HW + 2 * LP), jnp.float32),
                        pltpu.VMEM((Cmid, HW + 2 * LP), jnp.float32)],
        compiler_params=pltpu.CompilerParams(
            dimension_semantics=("parallel",)),        # batch axis -> both TCs on v7x
    )(up, masks, x1f, x2f, w1r, s1, b1, w2r, s2, b2)
    return out.reshape(B, Cout, H2, W2)


def init_up_params(key, in_channels, out_channels):
    mid = in_channels // 2  # bilinear=True branch of Up
    ks = jax.random.split(key, 10)
    eps = 1e-5

    w1 = 0.1 * jax.random.normal(ks[0], (3, 3, in_channels, mid), jnp.float32)
    g1 = 1.0 + 0.1 * jax.random.normal(ks[1], (mid,), jnp.float32)
    be1 = 0.1 * jax.random.normal(ks[2], (mid,), jnp.float32)
    m1 = 0.05 * jax.random.normal(ks[3], (mid,), jnp.float32)
    v1 = 0.9 + 0.1 * jax.random.uniform(ks[4], (mid,), jnp.float32)

    w2 = 0.1 * jax.random.normal(ks[5], (3, 3, mid, out_channels), jnp.float32)
    g2 = 1.0 + 0.1 * jax.random.normal(ks[6], (out_channels,), jnp.float32)
    be2 = 0.1 * jax.random.normal(ks[7], (out_channels,), jnp.float32)
    m2 = 0.05 * jax.random.normal(ks[8], (out_channels,), jnp.float32)
    v2 = 0.9 + 0.1 * jax.random.uniform(ks[9], (out_channels,), jnp.float32)

    s1 = g1 / jnp.sqrt(v1 + eps)
    b1 = be1 - m1 * s1
    s2 = g2 / jnp.sqrt(v2 + eps)
    b2 = be2 - m2 * s2
    return {"w1": w1, "s1": s1, "b1": b1, "w2": w2, "s2": s2, "b2": b2}


# ---------------- pure-JAX reference (for correctness check) ----------------

def _ref_conv_bn_relu(x_nchw, w, s, b):
    wt = jnp.transpose(w, (3, 2, 0, 1))  # (Cout, Cin, 3, 3)
    y = jax.lax.conv_general_dilated(
        x_nchw, wt, window_strides=(1, 1), padding=((1, 1), (1, 1)),
        dimension_numbers=("NCHW", "OIHW", "NCHW"))
    y = y * s[None, :, None, None] + b[None, :, None, None]
    return jnp.maximum(y, 0.0)


def ref_forward(x1, x2, params):
    B, C1, H, W = x1.shape
    ah = _interp_matrix(H, 2 * H)
    aw = _interp_matrix(W, 2 * W)
    x1u = jnp.einsum("oh,bchw->bcow", ah, x1)
    x1u = jnp.einsum("pw,bcow->bcop", aw, x1u)
    H2, W2 = x2.shape[2], x2.shape[3]
    diffY, diffX = H2 - x1u.shape[2], W2 - x1u.shape[3]
    x1u = jnp.pad(x1u, ((0, 0), (0, 0),
                        (diffY // 2, diffY - diffY // 2),
                        (diffX // 2, diffX - diffX // 2)))
    x = jnp.concatenate([x2, x1u], axis=1)
    y = _ref_conv_bn_relu(x, params["w1"], params["s1"], params["b1"])
    y = _ref_conv_bn_relu(y, params["w2"], params["s2"], params["b2"])
    return y


if __name__ == "__main__":
    key = jax.random.PRNGKey(0)
    kx1, kx2, kp = jax.random.split(key, 3)

    in_channels, out_channels = 8, 4
    B, H, W = 2, 8, 8
    # UNet convention: x1 (lower-res) and x2 (skip) each carry in_channels//2.
    x1 = jax.random.normal(kx1, (B, in_channels // 2, H, W), jnp.float32)
    x2 = jax.random.normal(kx2, (B, in_channels // 2, 2 * H, 2 * W), jnp.float32)

    params = init_up_params(kp, in_channels, out_channels)

    out = jax.block_until_ready(up_forward(x1, x2, params))
    assert out.shape == (B, out_channels, 2 * H, 2 * W), out.shape

    ref = jax.block_until_ready(ref_forward(x1, x2, params))
    np.testing.assert_allclose(np.asarray(out), np.asarray(ref),
                               atol=3e-2, rtol=3e-2)
    print("KERNEL_OK")
</pallas_src>

<mosaic_0001>
module attributes {stable_mosaic.version = 11 : i64} {
  func.func @_up_doubleconv_kernel(%arg0: i32, %arg1: memref<64x256xf32, #tpu.memory_space<vmem>>, %arg2: memref<9x1x256xf32, #tpu.memory_space<vmem>>, %arg3: memref<1x4x64xf32, #tpu.memory_space<vmem>>, %arg4: memref<1x4x256xf32, #tpu.memory_space<vmem>>, %arg5: memref<4x72xbf16, #tpu.memory_space<vmem>>, %arg6: memref<4x1xf32, #tpu.memory_space<vmem>>, %arg7: memref<4x1xf32, #tpu.memory_space<vmem>>, %arg8: memref<4x36xbf16, #tpu.memory_space<vmem>>, %arg9: memref<4x1xf32, #tpu.memory_space<vmem>>, %arg10: memref<4x1xf32, #tpu.memory_space<vmem>>, %arg11: memref<1x4x256xf32, #tpu.memory_space<vmem>>, %arg12: memref<8x512xf32, #tpu.memory_space<vmem>>, %arg13: memref<4x512xf32, #tpu.memory_space<vmem>>) attributes {dimension_semantics = [#tpu.dimension_semantics<parallel>], iteration_bounds = array<i64: 2>, scalar_prefetch = 0 : i64, scratch_operands = 2 : i64, tpu.core_type = #tpu.core_type<tc>, window_params = [{pipeline_mode = #tpu.pipeline_mode<synchronous>, transform_indices = @transform_0, window_bounds = array<i64: 64, 256>}, {pipeline_mode = #tpu.pipeline_mode<synchronous>, transform_indices = @transform_1, window_bounds = array<i64: 9, 1, 256>}, {transform_indices = @transform_2, window_bounds = array<i64: 1, 4, 64>}, {transform_indices = @transform_3, window_bounds = array<i64: 1, 4, 256>}, {pipeline_mode = #tpu.pipeline_mode<synchronous>, transform_indices = @transform_4, window_bounds = array<i64: 4, 72>}, {pipeline_mode = #tpu.pipeline_mode<synchronous>, transform_indices = @transform_5, window_bounds = array<i64: 4, 1>}, {pipeline_mode = #tpu.pipeline_mode<synchronous>, transform_indices = @transform_6, window_bounds = array<i64: 4, 1>}, {pipeline_mode = #tpu.pipeline_mode<synchronous>, transform_indices = @transform_7, window_bounds = array<i64: 4, 36>}, {pipeline_mode = #tpu.pipeline_mode<synchronous>, transform_indices = @transform_8, window_bounds = array<i64: 4, 1>}, {pipeline_mode = #tpu.pipeline_mode<synchronous>, transform_indices = @transform_9, window_bounds = array<i64: 4, 1>}, {transform_indices = @transform_10, window_bounds = array<i64: 1, 4, 256>}]} {
    %c0 = arith.constant 0 : index
    %c0_0 = arith.constant 0 : index
    %c0_1 = arith.constant 0 : index
    %0 = vector.load %arg2[%c0, %c0_0, %c0_1] : memref<9x1x256xf32, #tpu.memory_space<vmem>>, vector<9x1x256xf32>
    %c0_2 = arith.constant 0 : index
    %c0_3 = arith.constant 0 : index
    %c0_4 = arith.constant 0 : index
    %1 = vector.load %arg3[%c0_2, %c0_3, %c0_4] : memref<1x4x64xf32, #tpu.memory_space<vmem>>, vector<1x4x64xf32>
    %2 = vector.shape_cast %1 : vector<1x4x64xf32> to vector<4x64xf32>
    %c0_5 = arith.constant 0 : index
    %c0_6 = arith.constant 0 : index
    %3 = vector.load %arg1[%c0_5, %c0_6] : memref<64x256xf32, #tpu.memory_space<vmem>>, vector<64x256xf32>
    %cst = arith.constant dense<0.000000e+00> : vector<4x256xf32>
    %4 = tpu.matmul %2, %3, %cst {dimension_numbers = #tpu.dot_dimension_numbers<[1], [0], [0], [1], [0, 0, 1, 1], [], []>} : vector<4x64xf32>, vector<64x256xf32>, vector<4x256xf32> -> vector<4x256xf32>
    %cst_7 = arith.constant 0.000000e+00 : f32
    %5 = vector.broadcast %cst_7 : f32 to vector<8x512xf32>
    %c0_8 = arith.constant 0 : index
    %c0_9 = arith.constant 0 : index
    %6 = vector.load %arg12[%c0_8, %c0_9] : memref<8x512xf32, #tpu.memory_space<vmem>>, vector<8x512xf32>
    tpu.vector_store %arg12[%c0_8, %c0_9], %5 {strides = array<i32>} : memref<8x512xf32, #tpu.memory_space<vmem>>, vector<8x512xf32>,
    %c0_10 = arith.constant 0 : index
    %c0_11 = arith.constant 0 : index
    %c0_12 = arith.constant 0 : index
    %7 = vector.load %arg4[%c0_10, %c0_11, %c0_12] : memref<1x4x256xf32, #tpu.memory_space<vmem>>, vector<1x4x256xf32>
    %8 = vector.shape_cast %7 : vector<1x4x256xf32> to vector<4x256xf32>
    %c0_13 = arith.constant 0 : index
    %c128 = arith.constant 128 : index
    %9 = vector.load %arg12[%c0_13, %c128] : memref<8x512xf32, #tpu.memory_space<vmem>>, vector<4x256xf32>
    tpu.vector_store %arg12[%c0_13, %c128], %8 {strides = array<i32>} : memref<8x512xf32, #tpu.memory_space<vmem>>, vector<4x256xf32>,
    %c4 = arith.constant 4 : index
    %c128_14 = arith.constant 128 : index
    %10 = vector.load %arg12[%c4, %c128_14] : memref<8x512xf32, #tpu.memory_space<vmem>>, vector<4x256xf32>
    tpu.vector_store %arg12[%c4, %c128_14], %4 {strides = array<i32>} : memref<8x512xf32, #tpu.memory_space<vmem>>, vector<4x256xf32>,
    %c0_15 = arith.constant 0 : index
    %c111 = arith.constant 111 : index
    %11 = vector.load %arg12[%c0_15, %c111] : memref<8x512xf32, #tpu.memory_space<vmem>>, vector<8x256xf32>
    %12 = vector.extract_strided_slice %0 {offsets = [0, 0, 0], sizes = [1, 1, 256], strides = [1, 1, 1]} : vector<9x1x256xf32> to vector<1x1x256xf32>
    %13 = vector.shape_cast %12 : vector<1x1x256xf32> to vector<1x256xf32>
    %14 = vector.broadcast %13 : vector<1x256xf32> to vector<8x256xf32>
    %15 = arith.mulf %11, %14 : vector<8x256xf32>
    %c0_16 = arith.constant 0 : index
    %c112 = arith.constant 112 : index
    %16 = vector.load %arg12[%c0_16, %c112] : memref<8x512xf32, #tpu.memory_space<vmem>>, vector<8x256xf32>
    %17 = vector.extract_strided_slice %0 {offsets = [1, 0, 0], sizes = [1, 1, 256], strides = [1, 1, 1]} : vector<9x1x256xf32> to vector<1x1x256xf32>
    %18 = vector.shape_cast %17 : vector<1x1x256xf32> to vector<1x256xf32>
    %19 = vector.broadcast %18 : vector<1x256xf32> to vector<8x256xf32>
    %20 = arith.mulf %16, %19 : vector<8x256xf32>
    %c0_17 = arith.constant 0 : index
    %c113 = arith.constant 113 : index
    %21 = vector.load %arg12[%c0_17, %c113] : memref<8x512xf32, #tpu.memory_space<vmem>>, vector<8x256xf32>
    %22 = vector.extract_strided_slice %0 {offsets = [2, 0, 0], sizes = [1, 1, 256], strides = [1, 1, 1]} : vector<9x1x256xf32> to vector<1x1x256xf32>
    %23 = vector.shape_cast %22 : vector<1x1x256xf32> to vector<1x256xf32>
    %24 = vector.broadcast %23 : vector<1x256xf32> to vector<8x256xf32>
    %25 = arith.mulf %21, %24 : vector<8x256xf32>
    %c0_18 = arith.constant 0 : index
    %c127 = arith.constant 127 : index
    %26 = vector.load %arg12[%c0_18, %c127] : memref<8x512xf32, #tpu.memory_space<vmem>>, vector<8x256xf32>
    %27 = vector.extract_strided_slice %0 {offsets = [3, 0, 0], sizes = [1, 1, 256], strides = [1, 1, 1]} : vector<9x1x256xf32> to vector<1x1x256xf32>
    %28 = vector.shape_cast %27 : vector<1x1x256xf32> to vector<1x256xf32>
    %29 = vector.broadcast %28 : vector<1x256xf32> to vector<8x256xf32>
    %30 = arith.mulf %26, %29 : vector<8x256xf32>
    %c0_19 = arith.constant 0 : index
    %c128_20 = arith.constant 128 : index
    %31 = vector.load %arg12[%c0_19, %c128_20] : memref<8x512xf32, #tpu.memory_space<vmem>>, vector<8x256xf32>
    %32 = vector.extract_strided_slice %0 {offsets = [4, 0, 0], sizes = [1, 1, 256], strides = [1, 1, 1]} : vector<9x1x256xf32> to vector<1x1x256xf32>
    %33 = vector.shape_cast %32 : vector<1x1x256xf32> to vector<1x256xf32>
    %34 = vector.broadcast %33 : vector<1x256xf32> to vector<8x256xf32>
    %35 = arith.mulf %31, %34 : vector<8x256xf32>
    %c0_21 = arith.constant 0 : index
    %c129 = arith.constant 129 : index
    %36 = vector.load %arg12[%c0_21, %c129] : memref<8x512xf32, #tpu.memory_space<vmem>>, vector<8x256xf32>
    %37 = vector.extract_strided_slice %0 {offsets = [5, 0, 0], sizes = [1, 1, 256], strides = [1, 1, 1]} : vector<9x1x256xf32> to vector<1x1x256xf32>
    %38 = vector.shape_cast %37 : vector<1x1x256xf32> to vector<1x256xf32>
    %39 = vector.broadcast %38 : vector<1x256xf32> to vector<8x256xf32>
    %40 = arith.mulf %36, %39 : vector<8x256xf32>
    %c0_22 = arith.constant 0 : index
    %c143 = arith.constant 143 : index
    %41 = vector.load %arg12[%c0_22, %c143] : memref<8x512xf32, #tpu.memory_space<vmem>>, vector<8x256xf32>
    %42 = vector.extract_strided_slice %0 {offsets = [6, 0, 0], sizes = [1, 1, 256], strides = [1, 1, 1]} : vector<9x1x256xf32> to vector<1x1x256xf32>
    %43 = vector.shape_cast %42 : vector<1x1x256xf32> to vector<1x256xf32>
    %44 = vector.broadcast %43 : vector<1x256xf32> to vector<8x256xf32>
    %45 = arith.mulf %41, %44 : vector<8x256xf32>
    %c0_23 = arith.constant 0 : index
    %c144 = arith.constant 144 : index
    %46 = vector.load %arg12[%c0_23, %c144] : memref<8x512xf32, #tpu.memory_space<vmem>>, vector<8x256xf32>
    %47 = vector.extract_strided_slice %0 {offsets = [7, 0, 0], sizes = [1, 1, 256], strides = [1, 1, 1]} : vector<9x1x256xf32> to vector<1x1x256xf32>
    %48 = vector.shape_cast %47 : vector<1x1x256xf32> to vector<1x256xf32>
    %49 = vector.broadcast %48 : vector<1x256xf32> to vector<8x256xf32>
    %50 = arith.mulf %46, %49 : vector<8x256xf32>
    %c0_24 = arith.constant 0 : index
    %c145 = arith.constant 145 : index
    %51 = vector.load %arg12[%c0_24, %c145] : memref<8x512xf32, #tpu.memory_space<vmem>>, vector<8x256xf32>
    %52 = vector.extract_strided_slice %0 {offsets = [8, 0, 0], sizes = [1, 1, 256], strides = [1, 1, 1]} : vector<9x1x256xf32> to vector<1x1x256xf32>
    %53 = vector.shape_cast %52 : vector<1x1x256xf32> to vector<1x256xf32>
    %54 = vector.broadcast %53 : vector<1x256xf32> to vector<8x256xf32>
    %55 = arith.mulf %51, %54 : vector<8x256xf32>
    %56 = tpu.concatenate %15, %20, %25, %30, %35, %40, %45, %50, %55 in 0 : vector<8x256xf32>, vector<8x256xf32>, vector<8x256xf32>, vector<8x256xf32>, vector<8x256xf32>, vector<8x256xf32>, vector<8x256xf32>, vector<8x256xf32>, vector<8x256xf32> -> vector<72x256xf32>
    %57 = arith.truncf %56 : vector<72x256xf32> to vector<72x256xbf16>
    %c0_25 = arith.constant 0 : index
    %c0_26 = arith.constant 0 : index
    %58 = vector.load %arg5[%c0_25, %c0_26] : memref<4x72xbf16, #tpu.memory_space<vmem>>, vector<4x72xbf16>
    %cst_27 = arith.constant dense<0.000000e+00> : vector<4x256xf32>
    %59 = tpu.matmul %58, %57, %cst_27 {dimension_numbers = #tpu.dot_dimension_numbers<[1], [0], [0], [1], [0, 0, 1, 1], [], []>} : vector<4x72xbf16>, vector<72x256xbf16>, vector<4x256xf32> -> vector<4x256xf32>
    %c0_28 = arith.constant 0 : index
    %c0_29 = arith.constant 0 : index
    %60 = vector.load %arg6[%c0_28, %c0_29] : memref<4x1xf32, #tpu.memory_space<vmem>>, vector<4x1xf32>
    %61 = vector.broadcast %60 : vector<4x1xf32> to vector<4x256xf32>
    %62 = arith.mulf %59, %61 : vector<4x256xf32>
    %c0_30 = arith.constant 0 : index
    %c0_31 = arith.constant 0 : index
    %63 = vector.load %arg7[%c0_30, %c0_31] : memref<4x1xf32, #tpu.memory_space<vmem>>, vector<4x1xf32>
    %64 = vector.broadcast %63 : vector<4x1xf32> to vector<4x256xf32>
    %65 = arith.addf %62, %64 : vector<4x256xf32>
    %cst_32 = arith.constant 0.000000e+00 : f32
    %66 = vector.broadcast %cst_32 : f32 to vector<4x256xf32>
    %67 = arith.maximumf %65, %66 : vector<4x256xf32>
    %cst_33 = arith.constant 0.000000e+00 : f32
    %68 = vector.broadcast %cst_33 : f32 to vector<4x512xf32>
    %c0_34 = arith.constant 0 : index
    %c0_35 = arith.constant 0 : index
    %69 = vector.load %arg13[%c0_34, %c0_35] : memref<4x512xf32, #tpu.memory_space<vmem>>, vector<4x512xf32>
    tpu.vector_store %arg13[%c0_34, %c0_35], %68 {strides = array<i32>} : memref<4x512xf32, #tpu.memory_space<vmem>>, vector<4x512xf32>,
    %c0_36 = arith.constant 0 : index
    %c128_37 = arith.constant 128 : index
    %70 = vector.load %arg13[%c0_36, %c128_37] : memref<4x512xf32, #tpu.memory_space<vmem>>, vector<4x256xf32>
    tpu.vector_store %arg13[%c0_36, %c128_37], %67 {strides = array<i32>} : memref<4x512xf32, #tpu.memory_space<vmem>>, vector<4x256xf32>,
    %c0_38 = arith.constant 0 : index
    %c111_39 = arith.constant 111 : index
    %71 = vector.load %arg13[%c0_38, %c111_39] : memref<4x512xf32, #tpu.memory_space<vmem>>, vector<4x256xf32>
    %72 = vector.extract_strided_slice %0 {offsets = [0, 0, 0], sizes = [1, 1, 256], strides = [1, 1, 1]} : vector<9x1x256xf32> to vector<1x1x256xf32>
    %73 = vector.shape_cast %72 : vector<1x1x256xf32> to vector<1x256xf32>
    %74 = vector.broadcast %73 : vector<1x256xf32> to vector<4x256xf32>
    %75 = arith.mulf %71, %74 : vector<4x256xf32>
    %c0_40 = arith.constant 0 : index
    %c112_41 = arith.constant 112 : index
    %76 = vector.load %arg13[%c0_40, %c112_41] : memref<4x512xf32, #tpu.memory_space<vmem>>, vector<4x256xf32>
    %77 = vector.extract_strided_slice %0 {offsets = [1, 0, 0], sizes = [1, 1, 256], strides = [1, 1, 1]} : vector<9x1x256xf32> to vector<1x1x256xf32>
    %78 = vector.shape_cast %77 : vector<1x1x256xf32> to vector<1x256xf32>
    %79 = vector.broadcast %78 : vector<1x256xf32> to vector<4x256xf32>
    %80 = arith.mulf %76, %79 : vector<4x256xf32>
    %c0_42 = arith.constant 0 : index
    %c113_43 = arith.constant 113 : index
    %81 = vector.load %arg13[%c0_42, %c113_43] : memref<4x512xf32, #tpu.memory_space<vmem>>, vector<4x256xf32>
    %82 = vector.extract_strided_slice %0 {offsets = [2, 0, 0], sizes = [1, 1, 256], strides = [1, 1, 1]} : vector<9x1x256xf32> to vector<1x1x256xf32>
    %83 = vector.shape_cast %82 : vector<1x1x256xf32> to vector<1x256xf32>
    %84 = vector.broadcast %83 : vector<1x256xf32> to vector<4x256xf32>
    %85 = arith.mulf %81, %84 : vector<4x256xf32>
    %c0_44 = arith.constant 0 : index
    %c127_45 = arith.constant 127 : index
    %86 = vector.load %arg13[%c0_44, %c127_45] : memref<4x512xf32, #tpu.memory_space<vmem>>, vector<4x256xf32>
    %87 = vector.extract_strided_slice %0 {offsets = [3, 0, 0], sizes = [1, 1, 256], strides = [1, 1, 1]} : vector<9x1x256xf32> to vector<1x1x256xf32>
    %88 = vector.shape_cast %87 : vector<1x1x256xf32> to vector<1x256xf32>
    %89 = vector.broadcast %88 : vector<1x256xf32> to vector<4x256xf32>
    %90 = arith.mulf %86, %89 : vector<4x256xf32>
    %c0_46 = arith.constant 0 : index
    %c128_47 = arith.constant 128 : index
    %91 = vector.load %arg13[%c0_46, %c128_47] : memref<4x512xf32, #tpu.memory_space<vmem>>, vector<4x256xf32>
    %92 = vector.extract_strided_slice %0 {offsets = [4, 0, 0], sizes = [1, 1, 256], strides = [1, 1, 1]} : vector<9x1x256xf32> to vector<1x1x256xf32>
    %93 = vector.shape_cast %92 : vector<1x1x256xf32> to vector<1x256xf32>
    %94 = vector.broadcast %93 : vector<1x256xf32> to vector<4x256xf32>
    %95 = arith.mulf %91, %94 : vector<4x256xf32>
    %c0_48 = arith.constant 0 : index
    %c129_49 = arith.constant 129 : index
    %96 = vector.load %arg13[%c0_48, %c129_49] : memref<4x512xf32, #tpu.memory_space<vmem>>, vector<4x256xf32>
    %97 = vector.extract_strided_slice %0 {offsets = [5, 0, 0], sizes = [1, 1, 256], strides = [1, 1, 1]} : vector<9x1x256xf32> to vector<1x1x256xf32>
    %98 = vector.shape_cast %97 : vector<1x1x256xf32> to vector<1x256xf32>
    %99 = vector.broadcast %98 : vector<1x256xf32> to vector<4x256xf32>
    %100 = arith.mulf %96, %99 : vector<4x256xf32>
    %c0_50 = arith.constant 0 : index
    %c143_51 = arith.constant 143 : index
    %101 = vector.load %arg13[%c0_50, %c143_51] : memref<4x512xf32, #tpu.memory_space<vmem>>, vector<4x256xf32>
    %102 = vector.extract_strided_slice %0 {offsets = [6, 0, 0], sizes = [1, 1, 256], strides = [1, 1, 1]} : vector<9x1x256xf32> to vector<1x1x256xf32>
    %103 = vector.shape_cast %102 : vector<1x1x256xf32> to vector<1x256xf32>
    %104 = vector.broadcast %103 : vector<1x256xf32> to vector<4x256xf32>
    %105 = arith.mulf %101, %104 : vector<4x256xf32>
    %c0_52 = arith.constant 0 : index
    %c144_53 = arith.constant 144 : index
    %106 = vector.load %arg13[%c0_52, %c144_53] : memref<4x512xf32, #tpu.memory_space<vmem>>, vector<4x256xf32>
    %107 = vector.extract_strided_slice %0 {offsets = [7, 0, 0], sizes = [1, 1, 256], strides = [1, 1, 1]} : vector<9x1x256xf32> to vector<1x1x256xf32>
    %108 = vector.shape_cast %107 : vector<1x1x256xf32> to vector<1x256xf32>
    %109 = vector.broadcast %108 : vector<1x256xf32> to vector<4x256xf32>
    %110 = arith.mulf %106, %109 : vector<4x256xf32>
    %c0_54 = arith.constant 0 : index
    %c145_55 = arith.constant 145 : index
    %111 = vector.load %arg13[%c0_54, %c145_55] : memref<4x512xf32, #tpu.memory_space<vmem>>, vector<4x256xf32>
    %112 = vector.extract_strided_slice %0 {offsets = [8, 0, 0], sizes = [1, 1, 256], strides = [1, 1, 1]} : vector<9x1x256xf32> to vector<1x1x256xf32>
    %113 = vector.shape_cast %112 : vector<1x1x256xf32> to vector<1x256xf32>
    %114 = vector.broadcast %113 : vector<1x256xf32> to vector<4x256xf32>
    %115 = arith.mulf %111, %114 : vector<4x256xf32>
    %116 = tpu.concatenate %75, %80, %85, %90, %95, %100, %105, %110, %115 in 0 : vector<4x256xf32>, vector<4x256xf32>, vector<4x256xf32>, vector<4x256xf32>, vector<4x256xf32>, vector<4x256xf32>, vector<4x256xf32>, vector<4x256xf32>, vector<4x256xf32> -> vector<36x256xf32>
    %117 = arith.truncf %116 : vector<36x256xf32> to vector<36x256xbf16>
    %c0_56 = arith.constant 0 : index
    %c0_57 = arith.constant 0 : index
    %118 = vector.load %arg8[%c0_56, %c0_57] : memref<4x36xbf16, #tpu.memory_space<vmem>>, vector<4x36xbf16>
    %cst_58 = arith.constant dense<0.000000e+00> : vector<4x256xf32>
    %119 = tpu.matmul %118, %117, %cst_58 {dimension_numbers = #tpu.dot_dimension_numbers<[1], [0], [0], [1], [0, 0, 1, 1], [], []>} : vector<4x36xbf16>, vector<36x256xbf16>, vector<4x256xf32> -> vector<4x256xf32>
    %c0_59 = arith.constant 0 : index
    %c0_60 = arith.constant 0 : index
    %120 = vector.load %arg9[%c0_59, %c0_60] : memref<4x1xf32, #tpu.memory_space<vmem>>, vector<4x1xf32>
    %121 = vector.broadcast %120 : vector<4x1xf32> to vector<4x256xf32>
    %122 = arith.mulf %119, %121 : vector<4x256xf32>
    %c0_61 = arith.constant 0 : index
    %c0_62 = arith.constant 0 : index
    %123 = vector.load %arg10[%c0_61, %c0_62] : memref<4x1xf32, #tpu.memory_space<vmem>>, vector<4x1xf32>
    %124 = vector.broadcast %123 : vector<4x1xf32> to vector<4x256xf32>
    %125 = arith.addf %122, %124 : vector<4x256xf32>
    %cst_63 = arith.constant 0.000000e+00 : f32
    %126 = vector.broadcast %cst_63 : f32 to vector<4x256xf32>
    %127 = arith.maximumf %125, %126 : vector<4x256xf32>
    %c0_64 = arith.constant 0 : index
    %c0_65 = arith.constant 0 : index
    %c0_66 = arith.constant 0 : index
    %128 = vector.load %arg11[%c0_64, %c0_65, %c0_66] : memref<1x4x256xf32, #tpu.memory_space<vmem>>, vector<1x4x256xf32>
    %129 = vector.shape_cast %128 : vector<1x4x256xf32> to vector<4x256xf32>
    %130 = vector.shape_cast %127 : vector<4x256xf32> to vector<1x4x256xf32>
    tpu.vector_store %arg11[%c0_64, %c0_65, %c0_66], %130 {strides = array<i32>} : memref<1x4x256xf32, #tpu.memory_space<vmem>>, vector<1x4x256xf32>,
    return
  }
  func.func @transform_0(%arg0: i32) -> (i32, i32) {
    %c0_i32 = arith.constant 0 : i32
    %c0_i32_0 = arith.constant 0 : i32
    %c0_i32_1 = arith.constant 0 : i32
    return %c0_i32, %c0_i32_0 : i32, i32
  }
  func.func @transform_1(%arg0: i32) -> (i32, i32, i32) {
    %c0_i32 = arith.constant 0 : i32
    %c0_i32_0 = arith.constant 0 : i32
    %c0_i32_1 = arith.constant 0 : i32
    %c0_i32_2 = arith.constant 0 : i32
    return %c0_i32, %c0_i32_0, %c0_i32_1 : i32, i32, i32
  }
  func.func @transform_2(%arg0: i32) -> (i32, i32, i32) {
    %c0_i32 = arith.constant 0 : i32
    %c0_i32_0 = arith.constant 0 : i32
    %c0_i32_1 = arith.constant 0 : i32
    return %arg0, %c0_i32, %c0_i32_0 : i32, i32, i32
  }
  func.func @transform_3(%arg0: i32) -> (i32, i32, i32) {
    %c0_i32 = arith.constant 0 : i32
    %c0_i32_0 = arith.constant 0 : i32
    %c0_i32_1 = arith.constant 0 : i32
    return %arg0, %c0_i32, %c0_i32_0 : i32, i32, i32
  }
  func.func @transform_4(%arg0: i32) -> (i32, i32) {
    %c0_i32 = arith.constant 0 : i32
    %c0_i32_0 = arith.constant 0 : i32
    %c0_i32_1 = arith.constant 0 : i32
    return %c0_i32, %c0_i32_0 : i32, i32
  }
  func.func @transform_5(%arg0: i32) -> (i32, i32) {
    %c0_i32 = arith.constant 0 : i32
    %c0_i32_0 = arith.constant 0 : i32
    %c0_i32_1 = arith.constant 0 : i32
    return %c0_i32, %c0_i32_0 : i32, i32
  }
  func.func @transform_6(%arg0: i32) -> (i32, i32) {
    %c0_i32 = arith.constant 0 : i32
    %c0_i32_0 = arith.constant 0 : i32
    %c0_i32_1 = arith.constant 0 : i32
    return %c0_i32, %c0_i32_0 : i32, i32
  }
  func.func @transform_7(%arg0: i32) -> (i32, i32) {
    %c0_i32 = arith.constant 0 : i32
    %c0_i32_0 = arith.constant 0 : i32
    %c0_i32_1 = arith.constant 0 : i32
    return %c0_i32, %c0_i32_0 : i32, i32
  }
  func.func @transform_8(%arg0: i32) -> (i32, i32) {
    %c0_i32 = arith.constant 0 : i32
    %c0_i32_0 = arith.constant 0 : i32
    %c0_i32_1 = arith.constant 0 : i32
    return %c0_i32, %c0_i32_0 : i32, i32
  }
  func.func @transform_9(%arg0: i32) -> (i32, i32) {
    %c0_i32 = arith.constant 0 : i32
    %c0_i32_0 = arith.constant 0 : i32
    %c0_i32_1 = arith.constant 0 : i32
    return %c0_i32, %c0_i32_0 : i32, i32
  }
  func.func @transform_10(%arg0: i32) -> (i32, i32, i32) {
    %c0_i32 = arith.constant 0 : i32
    %c0_i32_0 = arith.constant 0 : i32
    %c0_i32_1 = arith.constant 0 : i32
    return %arg0, %c0_i32, %c0_i32_0 : i32, i32, i32
  }
}

</mosaic_0001>

<llo_original>
// kernel: tpu_custom_call.1
$region0: #{tpu_custom_call.1}
  #allocation0 [shape = 'u32[]', space=smem, size = 0x4, offset = 0x4, fixed_abs, tag = 'smem constant byte address 0x4 - core index']
  #allocation1 [shape = 'u32[144,128]{1,0:T(1,128)}', space=vmem, size = 0x12000, scoped, tag = 'internal scratch']
  #allocation2 [shape = 'f32[8,512]{1,0:T(8,128)}', space=vmem, size = 0x4000, scoped, tag = 'scratch operand']
  #allocation3 [shape = 'f32[4,512]{1,0:T(4,128)}', space=vmem, size = 0x2000, scoped, tag = 'scratch operand']
  %s0 = inlined_call_operand.hbm [shape: f32[64,256], index: 0, kind: input, shape index: {}]
  %s1 = inlined_call_operand.vmem [shape: f32[9,1,256], index: 1, kind: input, shape index: {}]
  %s2 = inlined_call_operand.vmem [shape: f32[2,4,64], index: 2, kind: input, shape index: {}]
  %s3 = inlined_call_operand.hbm [shape: f32[2,4,256], index: 3, kind: input, shape index: {}]
  %s4 = inlined_call_operand.vmem [shape: bf16[4,72], index: 4, kind: input, shape index: {}]
  %s5 = inlined_call_operand.vmem [shape: f32[4,1], index: 5, kind: input, shape index: {}]
  %s6 = inlined_call_operand.vmem [shape: f32[4,1], index: 6, kind: input, shape index: {}]
  %s7 = inlined_call_operand.vmem [shape: bf16[4,36], index: 7, kind: input, shape index: {}]
  %s8 = inlined_call_operand.vmem [shape: f32[4,1], index: 8, kind: input, shape index: {}]
  %s9 = inlined_call_operand.vmem [shape: f32[4,1], index: 9, kind: input, shape index: {}]
  %s10 = inlined_call_operand.hbm [shape: f32[2,4,256], index: 10, kind: output, shape index: {}]
  %s11 = sld [smem:[#allocation0]]
  $region81: #{tpu_custom_call.1} parent=0
    _
  %s13 = ssub.s32 1, %s11
  %s14 = scalar_select 0, %s13, %s11
  $region1: #{tpu_custom_call.1} parent=0
    #allocation4 [shape = 'u8[65536]{0}', space=vmem, size = 0x10000, scoped, tag = 'input window, operand 0, single buffered']
    #allocation5 [shape = 's32[2]{0}', space=sflag, size = 0x8, scoped, tag = 'scoped memory for tpu_custom_call.1']
    #allocation6 [shape = 's32[2]{0}', space=sflag, size = 0x8, scoped, tag = 'scoped memory for tpu_custom_call.1']
    #allocation7 [shape = 'u8[8192]{0}', space=vmem, size = 0x2000, scoped, tag = 'input window, operand 3']
    #allocation8 [shape = 's32[2]{0}', space=sflag, size = 0x8, scoped, tag = 'scoped memory for tpu_custom_call.1']
    #allocation9 [shape = 'u8[8192]{0}', space=vmem, size = 0x2000, scoped, tag = 'output window, operand 0']
    %15 = vsyncpa [#allocation5], 0
    %16 = vsyncpa [#allocation8], 0
    %s17 = scalar_lea.sflag [#allocation8], 1
    %18 = vsyncpa %s17, 0
    %19 = vsyncpa [#allocation6], 0
    %s20 = scalar_lea.sflag [#allocation6], 1
    %21 = vsyncpa %s20, 0
    loop: start=0, step=1, limit=4
    $region2: #{tpu_custom_call.1} parent=1 // loop_pre_header
      _
    $region3: #{tpu_custom_call.1} parent=1 // loop_header
      %s23 = sphi 0, %s27
      %p24 = scmp.ge.s32.totalorder %s23, 4
      %s31 = sphi 0, %s31
      %s33 = sphi 0, %s31
      %s34 = sphi 0, %s33
      %s48 = sphi 0, %s34
      %s52 = sphi 0, %s52
      %s54 = sphi 0, %s52
      %s55 = sphi 0, %s54
      %s69 = sphi 0, %s55
      %s75 = sphi 0, %s77
      %s78 = sphi 0, %s75
      %s79 = sphi 0, %s78
      %s95 = sphi 0, %s79
      %s101 = sphi 0, %s103
      %s104 = sphi 0, %s101
      %s105 = sphi 0, %s104
      %s121 = sphi 0, %s105
      %s125 = sphi 0, %s125
      %s127 = sphi 0, %s125
      %s128 = sphi 0, %s127
      %s142 = sphi 0, %s128
      %s146 = sphi 0, %s146
      %s148 = sphi 0, %s146
      %s149 = sphi 0, %s148
      %s163 = sphi 0, %s149
      %s167 = sphi 0, %s167
      %s169 = sphi 0, %s167
      %s170 = sphi 0, %s169
      %s184 = sphi 0, %s170
      %s188 = sphi 0, %s188
      %s190 = sphi 0, %s188
      %s191 = sphi 0, %s190
      %s205 = sphi 0, %s191
      %s209 = sphi 0, %s209
      %s211 = sphi 0, %s209
      %s212 = sphi 0, %s211
      %s226 = sphi 0, %s212
      %s230 = sphi 0, %s230
      %s232 = sphi 0, %s230
      %s233 = sphi 0, %s232
      %s247 = sphi 0, %s233
      %s253 = sphi 0, %s255
      %s256 = sphi 0, %s253
      %s257 = sphi 0, %s256
      %s273 = sphi 0, %s257
    $region4: #{tpu_custom_call.1} parent=1 // loop_header_branch
      %26 = sbr.rel (%p24) target = $region8
    $region5: #{tpu_custom_call.1} parent=1 // loop_body
      %s28 = ssub.s32 %s23, 1
      %s29 = ssub.s32 %s23, 2
      %s30 = sadd.s32 %s23, 1
      %s32 = sadd.s32 %s31, 1
      %p35 = scmp.eq.s32.totalorder %s23, 1
      %p36 = scmp.ne.s32.totalorder %s31, %s33
      %p37 = scmp.eq.s32.totalorder %s23, 0
      %p38 = por %p36, %p37
      %p39 = scmp.ne.s32.totalorder %s31, %s33
      %p40 = scmp.eq.s32.totalorder %s28, 1
      %p41 = por %p39, %p40
      %p42 = scmp.ne.s32.totalorder %s33, %s34
      %p43 = scmp.eq.s32.totalorder %s28, 0
      %p44 = por %p42, %p43
      %p45 = scmp.ne.s32.totalorder %s33, %s34
      %p46 = scmp.eq.s32.totalorder %s29, 1
      %p47 = por %p45, %p46
      %p49 = scmp.ne.s32.totalorder %s34, %s48
      %p50 = scmp.eq.s32.totalorder %s29, 0
      %p51 = por %p49, %p50
      %s53 = sadd.s32 %s52, 1
      %p56 = scmp.eq.s32.totalorder %s23, 1
      %p57 = scmp.ne.s32.totalorder %s52, %s54
      %p58 = scmp.eq.s32.totalorder %s23, 0
      %p59 = por %p57, %p58
      %p60 = scmp.ne.s32.totalorder %s52, %s54
      %p61 = scmp.eq.s32.totalorder %s28, 1
      %p62 = por %p60, %p61
      %p63 = scmp.ne.s32.totalorder %s54, %s55
      %p64 = scmp.eq.s32.totalorder %s28, 0
      %p65 = por %p63, %p64
      %p66 = scmp.ne.s32.totalorder %s54, %s55
      %p67 = scmp.eq.s32.totalorder %s29, 1
      %p68 = por %p66, %p67
      %p70 = scmp.ne.s32.totalorder %s55, %s69
      %p71 = scmp.eq.s32.totalorder %s29, 0
      %p72 = por %p70, %p71
      %s73 = ssub.s32 %s23, %s30
      %p74 = scmp.eq.s32.totalorder %s73, 0
      %s76 = sadd.s32 %s75, 1
      %s77 = scalar_select %p74, %s75, %s76
      %p80 = pneg %p74
      %p81 = scmp.eq.s32.totalorder %s23, 1
      %p82 = por %p80, %p81
      %p83 = scmp.ne.s32.totalorder %s75, %s78
      %p84 = scmp.eq.s32.totalorder %s23, 0
      %p85 = por %p83, %p84
      %p86 = scmp.ne.s32.totalorder %s75, %s78
      %p87 = scmp.eq.s32.totalorder %s28, 1
      %p88 = por %p86, %p87
      %p89 = scmp.ne.s32.totalorder %s78, %s79
      %p90 = scmp.eq.s32.totalorder %s28, 0
      %p91 = por %p89, %p90
      %p92 = scmp.ne.s32.totalorder %s78, %s79
      %p93 = scmp.eq.s32.totalorder %s29, 1
      %p94 = por %p92, %p93
      %p96 = scmp.ne.s32.totalorder %s79, %s95
      %p97 = scmp.eq.s32.totalorder %s29, 0
      %p98 = por %p96, %p97
      %s99 = ssub.s32 %s23, %s30
      %p100 = scmp.eq.s32.totalorder %s99, 0
      %s102 = sadd.s32 %s101, 1
      %s103 = scalar_select %p100, %s101, %s102
      %p106 = pneg %p100
      %p107 = scmp.eq.s32.totalorder %s23, 1
      %p108 = por %p106, %p107
      %p109 = scmp.ne.s32.totalorder %s101, %s104
      %p110 = scmp.eq.s32.totalorder %s23, 0
      %p111 = por %p109, %p110
      %p112 = scmp.ne.s32.totalorder %s101, %s104
      %p113 = scmp.eq.s32.totalorder %s28, 1
      %p114 = por %p112, %p113
      %p115 = scmp.ne.s32.totalorder %s104, %s105
      %p116 = scmp.eq.s32.totalorder %s28, 0
      %p117 = por %p115, %p116
      %p118 = scmp.ne.s32.totalorder %s104, %s105
      %p119 = scmp.eq.s32.totalorder %s29, 1
      %p120 = por %p118, %p119
      %p122 = scmp.ne.s32.totalorder %s105, %s121
      %p123 = scmp.eq.s32.totalorder %s29, 0
      %p124 = por %p122, %p123
      %s126 = sadd.s32 %s125, 1
      %p129 = scmp.eq.s32.totalorder %s23, 1
      %p130 = scmp.ne.s32.totalorder %s125, %s127
      %p131 = scmp.eq.s32.totalorder %s23, 0
      %p132 = por %p130, %p131
      %p133 = scmp.ne.s32.totalorder %s125, %s127
      %p134 = scmp.eq.s32.totalorder %s28, 1
      %p135 = por %p133, %p134
      %p136 = scmp.ne.s32.totalorder %s127, %s128
      %p137 = scmp.eq.s32.totalorder %s28, 0
      %p138 = por %p136, %p137
      %p139 = scmp.ne.s32.totalorder %s127, %s128
      %p140 = scmp.eq.s32.totalorder %s29, 1
      %p141 = por %p139, %p140
      %p143 = scmp.ne.s32.totalorder %s128, %s142
      %p144 = scmp.eq.s32.totalorder %s29, 0
      %p145 = por %p143, %p144
      %s147 = sadd.s32 %s146, 1
      %p150 = scmp.eq.s32.totalorder %s23, 1
      %p151 = scmp.ne.s32.totalorder %s146, %s148
      %p152 = scmp.eq.s32.totalorder %s23, 0
      %p153 = por %p151, %p152
      %p154 = scmp.ne.s32.totalorder %s146, %s148
      %p155 = scmp.eq.s32.totalorder %s28, 1
      %p156 = por %p154, %p155
      %p157 = scmp.ne.s32.totalorder %s148, %s149
      %p158 = scmp.eq.s32.totalorder %s28, 0
      %p159 = por %p157, %p158
      %p160 = scmp.ne.s32.totalorder %s148, %s149
      %p161 = scmp.eq.s32.totalorder %s29, 1
      %p162 = por %p160, %p161
      %p164 = scmp.ne.s32.totalorder %s149, %s163
      %p165 = scmp.eq.s32.totalorder %s29, 0
      %p166 = por %p164, %p165
      %s168 = sadd.s32 %s167, 1
      %p171 = scmp.eq.s32.totalorder %s23, 1
      %p172 = scmp.ne.s32.totalorder %s167, %s169
      %p173 = scmp.eq.s32.totalorder %s23, 0
      %p174 = por %p172, %p173
      %p175 = scmp.ne.s32.totalorder %s167, %s169
      %p176 = scmp.eq.s32.totalorder %s28, 1
      %p177 = por %p175, %p176
      %p178 = scmp.ne.s32.totalorder %s169, %s170
      %p179 = scmp.eq.s32.totalorder %s28, 0
      %p180 = por %p178, %p179
      %p181 = scmp.ne.s32.totalorder %s169, %s170
      %p182 = scmp.eq.s32.totalorder %s29, 1
      %p183 = por %p181, %p182
      %p185 = scmp.ne.s32.totalorder %s170, %s184
      %p186 = scmp.eq.s32.totalorder %s29, 0
      %p187 = por %p185, %p186
      %s189 = sadd.s32 %s188, 1
      %p192 = scmp.eq.s32.totalorder %s23, 1
      %p193 = scmp.ne.s32.totalorder %s188, %s190
      %p194 = scmp.eq.s32.totalorder %s23, 0
      %p195 = por %p193, %p194
      %p196 = scmp.ne.s32.totalorder %s188, %s190
      %p197 = scmp.eq.s32.totalorder %s28, 1
      %p198 = por %p196, %p197
      %p199 = scmp.ne.s32.totalorder %s190, %s191
      %p200 = scmp.eq.s32.totalorder %s28, 0
      %p201 = por %p199, %p200
      %p202 = scmp.ne.s32.totalorder %s190, %s191
      %p203 = scmp.eq.s32.totalorder %s29, 1
      %p204 = por %p202, %p203
      %p206 = scmp.ne.s32.totalorder %s191, %s205
      %p207 = scmp.eq.s32.totalorder %s29, 0
      %p208 = por %p206, %p207
      %s210 = sadd.s32 %s209, 1
      %p213 = scmp.eq.s32.totalorder %s23, 1
      %p214 = scmp.ne.s32.totalorder %s209, %s211
      %p215 = scmp.eq.s32.totalorder %s23, 0
      %p216 = por %p214, %p215
      %p217 = scmp.ne.s32.totalorder %s209, %s211
      %p218 = scmp.eq.s32.totalorder %s28, 1
      %p219 = por %p217, %p218
      %p220 = scmp.ne.s32.totalorder %s211, %s212
      %p221 = scmp.eq.s32.totalorder %s28, 0
      %p222 = por %p220, %p221
      %p223 = scmp.ne.s32.totalorder %s211, %s212
      %p224 = scmp.eq.s32.totalorder %s29, 1
      %p225 = por %p223, %p224
      %p227 = scmp.ne.s32.totalorder %s212, %s226
      %p228 = scmp.eq.s32.totalorder %s29, 0
      %p229 = por %p227, %p228
      %s231 = sadd.s32 %s230, 1
      %p234 = scmp.eq.s32.totalorder %s23, 1
      %p235 = scmp.ne.s32.totalorder %s230, %s232
      %p236 = scmp.eq.s32.totalorder %s23, 0
      %p237 = por %p235, %p236
      %p238 = scmp.ne.s32.totalorder %s230, %s232
      %p239 = scmp.eq.s32.totalorder %s28, 1
      %p240 = por %p238, %p239
      %p241 = scmp.ne.s32.totalorder %s232, %s233
      %p242 = scmp.eq.s32.totalorder %s28, 0
      %p243 = por %p241, %p242
      %p244 = scmp.ne.s32.totalorder %s232, %s233
      %p245 = scmp.eq.s32.totalorder %s29, 1
      %p246 = por %p244, %p245
      %p248 = scmp.ne.s32.totalorder %s233, %s247
      %p249 = scmp.eq.s32.totalorder %s29, 0
      %p250 = por %p248, %p249
      %s251 = ssub.s32 %s23, %s30
      %p252 = scmp.eq.s32.totalorder %s251, 0
      %s254 = sadd.s32 %s253, 1
      %s255 = scalar_select %p252, %s253, %s254
      %p258 = pneg %p252
      %p259 = scmp.eq.s32.totalorder %s23, 1
      %p260 = por %p258, %p259
      %p261 = scmp.ne.s32.totalorder %s253, %s256
      %p262 = scmp.eq.s32.totalorder %s23, 0
      %p263 = por %p261, %p262
      %p264 = scmp.ne.s32.totalorder %s253, %s256
      %p265 = scmp.eq.s32.totalorder %s28, 1
      %p266 = por %p264, %p265
      %p267 = scmp.ne.s32.totalorder %s256, %s257
      %p268 = scmp.eq.s32.totalorder %s28, 0
      %p269 = por %p267, %p268
      %p270 = scmp.ne.s32.totalorder %s256, %s257
      %p271 = scmp.eq.s32.totalorder %s29, 1
      %p272 = por %p270, %p271
      %p274 = scmp.ne.s32.totalorder %s257, %s273
      %p275 = scmp.eq.s32.totalorder %s29, 0
      %p276 = por %p274, %p275
      %p277 = scmp.le.s32.totalorder 1, %s23
      %p278 = scmp.lt.s32.totalorder %s23, 3
      %p279 = pnand %p277, %p278
      %p280 = pneg %p279
      // Predicated region
      $region9: #{tpu_custom_call.1} parent=5 // pred_check
        _
      $region10: #{tpu_custom_call.1} parent=5 // pred_check_branch
        %282 = sbr.rel (%p279) target = $region12
      $region11: #{tpu_custom_call.1} parent=5 // pred_region
        %s283 = ssub.s32 %s23, 1
        // Predicated region
        $region13: #{tpu_custom_call.1} parent=11 // pred_check
          %p284 = pneg %p44
        $region14: #{tpu_custom_call.1} parent=11 // pred_check_branch
          %286 = sbr.rel (%p284) target = $region16
        $region15: #{tpu_custom_call.1} parent=11 // pred_region
          %s288 = ssub.s32 2048, 2048
          %289 = vsyncadd [#allocation5], %s288
          %s290 = sshll.u32 [#allocation4], 4
          %s291 = int_to_ptr.vmem [resolvable:$true] %s290
          %296 = dma.hbm_to_vmem [thread:$0]  %s0, 2048, %s291, [#allocation5], 256, 256, 16
        $region16: #{tpu_custom_call.1} parent=11 // pred_fallthru
          _
        // Predicated region
        $region17: #{tpu_custom_call.1} parent=11 // pred_check
          %p297 = pneg %p65
        $region18: #{tpu_custom_call.1} parent=11 // pred_check_branch
          %299 = sbr.rel (%p297) target = $region20
        $region19: #{tpu_custom_call.1} parent=11 // pred_region
          _
        $region20: #{tpu_custom_call.1} parent=11 // pred_fallthru
          _
        // Predicated region
        $region21: #{tpu_custom_call.1} parent=11 // pred_check
          %p300 = pneg %p138
        $region22: #{tpu_custom_call.1} parent=11 // pred_check_branch
          %302 = sbr.rel (%p300) target = $region24
        $region23: #{tpu_custom_call.1} parent=11 // pred_region
          _
        $region24: #{tpu_custom_call.1} parent=11 // pred_fallthru
          _
        // Predicated region
        $region25: #{tpu_custom_call.1} parent=11 // pred_check
          %p303 = pneg %p159
        $region26: #{tpu_custom_call.1} parent=11 // pred_check_branch
          %305 = sbr.rel (%p303) target = $region28
        $region27: #{tpu_custom_call.1} parent=11 // pred_region
          _
        $region28: #{tpu_custom_call.1} parent=11 // pred_fallthru
          _
        // Predicated region
        $region29: #{tpu_custom_call.1} parent=11 // pred_check
          %p306 = pneg %p180
        $region30: #{tpu_custom_call.1} parent=11 // pred_check_branch
          %308 = sbr.rel (%p306) target = $region32
        $region31: #{tpu_custom_call.1} parent=11 // pred_region
          _
        $region32: #{tpu_custom_call.1} parent=11 // pred_fallthru
          _
        // Predicated region
        $region33: #{tpu_custom_call.1} parent=11 // pred_check
          %p309 = pneg %p201
        $region34: #{tpu_custom_call.1} parent=11 // pred_check_branch
          %311 = sbr.rel (%p309) target = $region36
        $region35: #{tpu_custom_call.1} parent=11 // pred_region
          _
        $region36: #{tpu_custom_call.1} parent=11 // pred_fallthru
          _
        // Predicated region
        $region37: #{tpu_custom_call.1} parent=11 // pred_check
          %p312 = pneg %p222
        $region38: #{tpu_custom_call.1} parent=11 // pred_check_branch
          %314 = sbr.rel (%p312) target = $region40
        $region39: #{tpu_custom_call.1} parent=11 // pred_region
          _
        $region40: #{tpu_custom_call.1} parent=11 // pred_fallthru
          _
        // Predicated region
        $region41: #{tpu_custom_call.1} parent=11 // pred_check
          %p315 = pneg %p243
        $region42: #{tpu_custom_call.1} parent=11 // pred_check_branch
          %317 = sbr.rel (%p315) target = $region44
        $region43: #{tpu_custom_call.1} parent=11 // pred_region
          _
        $region44: #{tpu_custom_call.1} parent=11 // pred_fallthru
          _
      $region12: #{tpu_custom_call.1} parent=5 // pred_fallthru
        _
      %p318 = scmp.lt.s32.totalorder %s23, 2
      // Predicated region
      $region45: #{tpu_custom_call.1} parent=5 // pred_check
        %p319 = pneg %p318
      $region46: #{tpu_custom_call.1} parent=5 // pred_check_branch
        %321 = sbr.rel (%p319) target = $region48
      $region47: #{tpu_custom_call.1} parent=5 // pred_region
        // Predicated region
        $region49: #{tpu_custom_call.1} parent=47 // pred_check
          %p322 = pneg %p85
        $region50: #{tpu_custom_call.1} parent=47 // pred_check_branch
          %324 = sbr.rel (%p322) target = $region52
        $region51: #{tpu_custom_call.1} parent=47 // pred_region
          %p325 = scmp.lt.s32.totalorder %s23, 1
          %s326 = scalar_select %p325, %s23, 1
          %s327 = smul.addr %s326, 4
          %s328 = scalar_lea.vmem %s2, %s327
        $region52: #{tpu_custom_call.1} parent=47 // pred_fallthru
          _
        // Predicated region
        $region53: #{tpu_custom_call.1} parent=47 // pred_check
          %p329 = pneg %p111
        $region54: #{tpu_custom_call.1} parent=47 // pred_check_branch
          %331 = sbr.rel (%p329) target = $region56
        $region55: #{tpu_custom_call.1} parent=47 // pred_region
          %s332 = sand.u32 %s101, 1
          %s333 = scalar_lea.sflag [#allocation8], %s332
          %s334 = sand.u32 %s101, 1
          %s335 = smul.addr %s334, 8
          %s336 = scalar_lea.vmem [#allocation7], %s335
          %s338 = ssub.s32 128, 128
          %339 = vsyncadd %s333, %s338
          %s340 = smul.addr %s23, 2
          %s341 = smul.addr %s340, 64
          %s342 = scalar_lea.hbm %s3, %s341
          %s344 = sshll.u32 %s336, 4
          %s345 = int_to_ptr.vmem [resolvable:$true] %s344
          %347 = dma.hbm_to_vmem [thread:$0]  %s342, 128, %s345, %s333
        $region56: #{tpu_custom_call.1} parent=47 // pred_fallthru
          _
      $region48: #{tpu_custom_call.1} parent=5 // pred_fallthru
        _
      %p348 = scmp.le.s32.totalorder 1, %s23
      %p349 = scmp.lt.s32.totalorder %s23, 3
      %p350 = pnand %p348, %p349
      %p351 = pneg %p350
      // Predicated region
      $region57: #{tpu_custom_call.1} parent=5 // pred_check
        _
      $region58: #{tpu_custom_call.1} parent=5 // pred_check_branch
        %353 = sbr.rel (%p350) target = $region60
      $region59: #{tpu_custom_call.1} parent=5 // pred_region
        %s354 = ssub.s32 %s23, 1
        // Predicated region
        $region61: #{tpu_custom_call.1} parent=59 // pred_check
          %p355 = pneg %p44
        $region62: #{tpu_custom_call.1} parent=59 // pred_check_branch
          %357 = sbr.rel (%p355) target = $region64
        $region63: #{tpu_custom_call.1} parent=59 // pred_region
          %358 = dma.done [#allocation5], 2048
        $region64: #{tpu_custom_call.1} parent=59 // pred_fallthru
          _
        %s359 = sand.u32 %s104, 1
        %s360 = scalar_lea.sflag [#allocation8], %s359
        %s361 = sand.u32 %s104, 1
        %s362 = smul.addr %s361, 8
        %s363 = scalar_lea.vmem [#allocation7], %s362
        // Predicated region
        $region65: #{tpu_custom_call.1} parent=59 // pred_check
          %p364 = pneg %p117
        $region66: #{tpu_custom_call.1} parent=59 // pred_check_branch
          %366 = sbr.rel (%p364) target = $region68
        $region67: #{tpu_custom_call.1} parent=59 // pred_region
          %367 = dma.done %s360, 128
        $region68: #{tpu_custom_call.1} parent=59 // pred_fallthru
          _
        %p368 = pneg %p44
        %p369 = pneg %p41
        %p370 = pneg %p65
        %p371 = pneg %p62
        %p372 = scmp.lt.s32.totalorder %s28, 1
        %s373 = scalar_select %p372, %s28, 1
        %s374 = smul.addr %s373, 4
        %s375 = scalar_lea.vmem %s2, %s374
        %p376 = pneg %p91
        %p377 = pneg %p88
        %s378 = sand.u32 %s104, 1
        %s379 = scalar_lea.sflag [#allocation8], %s378
        %s380 = sand.u32 %s104, 1
        %s381 = smul.addr %s380, 8
        %s382 = scalar_lea.vmem [#allocation7], %s381
        %p383 = pneg %p117
        %p384 = pneg %p114
        %p385 = pneg %p138
        %p386 = pneg %p135
        %p387 = pneg %p159
        %p388 = pneg %p156
        %p389 = pneg %p180
        %p390 = pneg %p177
        %p391 = pneg %p201
        %p392 = pneg %p198
        %p393 = pneg %p222
        %p394 = pneg %p219
        %p395 = pneg %p243
        %p396 = pneg %p240
        %p397 = pneg %p269
        %p398 = pneg %p266
        %s399 = sand.u32 %s256, 1
        %s400 = scalar_lea.sflag [#allocation6], %s399
        %s401 = sand.u32 %s256, 1
        %s402 = smul.addr %s401, 8
        %s403 = scalar_lea.vmem [#allocation9], %s402
        %p404 = scmp.lt.s32.totalorder %s28, 1
        %s405 = scalar_select %p404, %s28, 1
        %s406 = smul.addr %s405, 4
        %s407 = scalar_lea.vmem %s2, %s406
        %v409 = vld [vmem:[%s1] sm:$0x3]
        %v410 = vld [vmem:[%s1 + $0x2] sm:$0x3]
        %v411 = vld [vmem:[%s1 + $0x4] sm:$0x3]
        %v412 = vld [vmem:[%s1 + $0x6] sm:$0x3]
        %v413 = vld [vmem:[%s1 + $0x8] sm:$0x3]
        %v414 = vld [vmem:[%s1 + $0xa] sm:$0x3]
        %v415 = vld [vmem:[%s1 + $0xc] sm:$0x3]
        %v416 = vld [vmem:[%s1 + $0xe] sm:$0x3]
        %v417 = vld [vmem:[%s1 + $0x10] sm:$0x3]
        %v418 = vld [vmem:[%s407] sm:$0xf]
        %v419 = vld [vmem:[#allocation4] sm:$0xff]
        %v420 = vld [vmem:[#allocation4 + $0x8] sm:$0xff]
        %v421 = vld [vmem:[#allocation4 + $0x10] sm:$0xff]
        %v422 = vld [vmem:[#allocation4 + $0x18] sm:$0xff]
        %v423 = vld [vmem:[#allocation4 + $0x20] sm:$0xff]
        %v424 = vld [vmem:[#allocation4 + $0x28] sm:$0xff]
        %v425 = vld [vmem:[#allocation4 + $0x30] sm:$0xff]
        %v426 = vld [vmem:[#allocation4 + $0x38] sm:$0xff]
        %v427 = vld [vmem:[#allocation4 + $0x40] sm:$0xff]
        %v428 = vld [vmem:[#allocation4 + $0x48] sm:$0xff]
        %v429 = vld [vmem:[#allocation4 + $0x50] sm:$0xff]
        %v430 = vld [vmem:[#allocation4 + $0x58] sm:$0xff]
        %v431 = vld [vmem:[#allocation4 + $0x60] sm:$0xff]
        %v432 = vld [vmem:[#allocation4 + $0x68] sm:$0xff]
        %v433 = vld [vmem:[#allocation4 + $0x70] sm:$0xff]
        %v434 = vld [vmem:[#allocation4 + $0x78] sm:$0xff]
        %vm435 = vcmask 523264
        %v437 = vsel %vm435, %v418, 0
        %439 = vmatprep.subr.mxu0 %v420
        %440 = vmatpush1.msra.mxu0 %v419
        %441 = vmatprep.subr.mxu0 %v422
        %442 = vmatpush1.msra.mxu0 %v421
        %443 = vmatprep.subr.mxu0 %v424
        %444 = vmatpush1.msra.mxu0 %v423
        %445 = vmatprep.subr.mxu0 %v426
        %446 = vmatpush1.msra.mxu0 %v425
        %447 = vmatprep.subr.mxu0 %v428
        %448 = vmatpush1.msra.mxu0 %v427
        %449 = vmatprep.subr.mxu0 %v430
        %450 = vmatpush1.msra.mxu0 %v429
        %451 = vmatprep.subr.mxu0 %v432
        %452 = vmatpush1.msra.mxu0 %v431
        %453 = vmatprep.subr.mxu0 %v434
        %454 = vmatpush1.msra.mxu0 %v433
        %455 = vmatprep.subr.mxu0 0.0
        %456 = vmatpush1.msra.mxu0 0.0
        %457 = vmatprep.subr.mxu0 0.0
        %458 = vmatpush1.msra.mxu0 0.0
        %459 = vmatprep.subr.mxu0 0.0
        %460 = vmatpush1.msra.mxu0 0.0
        %461 = vmatprep.subr.mxu0 0.0
        %462 = vmatpush1.msra.mxu0 0.0
        %463 = vmatprep.subr.mxu0 0.0
        %464 = vmatpush1.msra.mxu0 0.0
        %465 = vmatprep.subr.mxu0 0.0
        %466 = vmatpush1.msra.mxu0 0.0
        %467 = vmatprep.subr.mxu0 0.0
        %468 = vmatpush1.msra.mxu0 0.0
        %469 = vmatprep.subr.mxu0 0.0
        %470 = vmatpush1.msra.mxu0 0.0
        %471 = vmatprep.subr.mxu0 0.0
        %472 = vmatpush1.msra.mxu0 0.0
        %473 = vmatprep.subr.mxu0 0.0
        %474 = vmatpush1.msra.mxu0 0.0
        %475 = vmatprep.subr.mxu0 0.0
        %476 = vmatpush1.msra.mxu0 0.0
        %477 = vmatprep.subr.mxu0 0.0
        %478 = vmatpush1.msra.mxu0 0.0
        %479 = vmatprep.subr.mxu0 0.0
        %480 = vmatpush1.msra.mxu0 0.0
        %481 = vmatprep.subr.mxu0 0.0
        %482 = vmatpush1.msra.mxu0 0.0
        %483 = vmatprep.subr.mxu0 0.0
        %484 = vmatpush1.msra.mxu0 0.0
        %485 = vmatprep.subr.mxu0 0.0
        %486 = vmatpush1.msra.mxu0 0.0
        %487 = vmatprep.subr.mxu0 0.0
        %488 = vmatpush1.msra.mxu0 0.0
        %489 = vmatprep.subr.mxu0 0.0
        %490 = vmatpush1.msra.mxu0 0.0
        %491 = vmatprep.subr.mxu0 0.0
        %492 = vmatpush1.msra.mxu0 0.0
        %493 = vmatprep.subr.mxu0 0.0
        %494 = vmatpush1.msra.mxu0 0.0
        %495 = vmatprep.subr.mxu0 0.0
        %496 = vmatpush1.msra.mxu0 0.0
        %497 = vmatprep.subr.mxu0 0.0
        %498 = vmatpush1.msra.mxu0 0.0
        %499 = vmatprep.subr.mxu0 0.0
        %500 = vmatpush1.msra.mxu0 0.0
        %501 = vmatprep.subr.mxu0 0.0
        %502 = vmatpush1.msra.mxu0 0.0
        %503 = vmatprep.mubr.f32.mxu0 0.0
        %504 = vmatmul.mubr.f32.gmra.mrb[0].mxu0 %v437
        %v505 = vpop.f32.mrb[0].mxu0
        %v506 = vadd.f32 0.0, %v505
        %v507 = vpop.f32.mrb[0].mxu0
        %v508 = vadd.f32 0.0, %v507
        %509 = vdwg.mxu0
        %510 = vst [vmem:[#allocation2] sm:$0xff] 0.0
        %511 = vst [vmem:[#allocation2 + $0x8] sm:$0xff] 0.0
        %512 = vst [vmem:[#allocation2 + $0x10] sm:$0xff] 0.0
        %513 = vst [vmem:[#allocation2 + $0x18] sm:$0xff] 0.0
        %v514 = vld [vmem:[%s363] sm:$0xff]
        %v516 = vcombine.high %v514, %v514
        %518 = vst [vmem:[#allocation2 + $0x8] sm:$0xf] %v514
        %519 = vst [vmem:[#allocation2 + $0x10] sm:$0xf] %v516
        %v522 = vrot.slane %v506, 4
        %v523 = vrot.slane %v508, 4
        %526 = vst [vmem:[#allocation2 + $0x8] sm:$0xf0] %v522
        %527 = vst [vmem:[#allocation2 + $0x10] sm:$0xf0] %v523
        %v528 = vld [vmem:[#allocation2] sm:$0xff]
        %v529 = vld [vmem:[#allocation2 + $0x8] sm:$0xff]
        %v530 = vld [vmem:[#allocation2 + $0x10] sm:$0xff]
        %v532 = vlaneseq
        %v533 = vshrl.u32 %v532, 7
        %v534 = vsub.s32 0, %v533
        %v535 = vrot.slane %v409, %v534
        %v536 = vlaneseq
        %v537 = vshrl.u32 %v536, 7
        %v538 = vsub.s32 1, %v537
        %v539 = vrot.slane %v409, %v538
        %540 = vrot.lane.b32.xlu0 %v535, 111
        %v541 = vpop.permute.xlu0 %540
        %542 = vrot.lane.b32.xlu0 %v539, 111
        %v543 = vpop.permute.xlu0 %542
        %vm544 = vcmask 908288
        %v545 = vsel %vm544, %v541, %v543
        %v549 = vmul.f32 %v528, %v541
        %v550 = vmul.f32 %v529, %v545
        %v551 = vmul.f32 %v530, %v543
        %v553 = vlaneseq
        %v554 = vshrl.u32 %v553, 7
        %v555 = vsub.s32 0, %v554
        %v556 = vrot.slane %v410, %v555
        %v557 = vlaneseq
        %v558 = vshrl.u32 %v557, 7
        %v559 = vsub.s32 1, %v558
        %v560 = vrot.slane %v410, %v559
        %561 = vrot.lane.b32.xlu0 %v556, 112
        %v562 = vpop.permute.xlu0 %561
        %563 = vrot.lane.b32.xlu0 %v560, 112
        %v564 = vpop.permute.xlu0 %563
        %vm565 = vcmask 916480
        %v566 = vsel %vm565, %v562, %v564
        %v570 = vmul.f32 %v528, %v562
        %v571 = vmul.f32 %v529, %v566
        %v572 = vmul.f32 %v530, %v564
        %v574 = vlaneseq
        %v575 = vshrl.u32 %v574, 7
        %v576 = vsub.s32 0, %v575
        %v577 = vrot.slane %v411, %v576
        %v578 = vlaneseq
        %v579 = vshrl.u32 %v578, 7
        %v580 = vsub.s32 1, %v579
        %v581 = vrot.slane %v411, %v580
        %582 = vrot.lane.b32.xlu0 %v577, 113
        %v583 = vpop.permute.xlu0 %582
        %584 = vrot.lane.b32.xlu0 %v581, 113
        %v585 = vpop.permute.xlu0 %584
        %vm586 = vcmask 924672
        %v587 = vsel %vm586, %v583, %v585
        %v591 = vmul.f32 %v528, %v583
        %v592 = vmul.f32 %v529, %v587
        %v593 = vmul.f32 %v530, %v585
        %v595 = vlaneseq
        %v596 = vshrl.u32 %v595, 7
        %v597 = vsub.s32 0, %v596
        %v598 = vrot.slane %v412, %v597
        %v599 = vlaneseq
        %v600 = vshrl.u32 %v599, 7
        %v601 = vsub.s32 1, %v600
        %v602 = vrot.slane %v412, %v601
        %603 = vrot.lane.b32.xlu0 %v598, 127
        %v604 = vpop.permute.xlu0 %603
        %605 = vrot.lane.b32.xlu0 %v602, 127
        %v606 = vpop.permute.xlu0 %605
        %vm607 = vcmask 1039360
        %v608 = vsel %vm607, %v604, %v606
        %v612 = vmul.f32 %v528, %v604
        %v613 = vmul.f32 %v529, %v608
        %v614 = vmul.f32 %v530, %v606
        %v616 = vlaneseq
        %v617 = vshrl.u32 %v616, 7
        %v618 = vsub.s32 0, %v617
        %v619 = vrot.slane %v413, %v618
        %v620 = vlaneseq
        %v621 = vshrl.u32 %v620, 7
        %v622 = vsub.s32 1, %v621
        %v623 = vrot.slane %v413, %v622
        %v626 = vmul.f32 %v529, %v619
        %v627 = vmul.f32 %v530, %v623
        %v628 = vld [vmem:[#allocation2 + $0x8] sm:$0xff]
        %v629 = vld [vmem:[#allocation2 + $0x10] sm:$0xff]
        %v630 = vld [vmem:[#allocation2 + $0x18] sm:$0xff]
        %v632 = vlaneseq
        %v633 = vshrl.u32 %v632, 7
        %v634 = vsub.s32 0, %v633
        %v635 = vrot.slane %v414, %v634
        %v636 = vlaneseq
        %v637 = vshrl.u32 %v636, 7
        %v638 = vsub.s32 1, %v637
        %v639 = vrot.slane %v414, %v638
        %640 = vrot.lane.b32.xlu0 %v635, 1
        %v641 = vpop.permute.xlu0 %640
        %642 = vrot.lane.b32.xlu0 %v639, 1
        %v643 = vpop.permute.xlu0 %642
        %vm644 = vcmask 7168
        %v645 = vsel %vm644, %v641, %v643
        %v649 = vmul.f32 %v628, %v641
        %v650 = vmul.f32 %v629, %v645
        %v651 = vmul.f32 %v630, %v643
        %v653 = vlaneseq
        %v654 = vshrl.u32 %v653, 7
        %v655 = vsub.s32 0, %v654
        %v656 = vrot.slane %v415, %v655
        %v657 = vlaneseq
        %v658 = vshrl.u32 %v657, 7
        %v659 = vsub.s32 1, %v658
        %v660 = vrot.slane %v415, %v659
        %661 = vrot.lane.b32.xlu0 %v656, 15
        %v662 = vpop.permute.xlu0 %661
        %663 = vrot.lane.b32.xlu0 %v660, 15
        %v664 = vpop.permute.xlu0 %663
        %vm665 = vcmask 121856
        %v666 = vsel %vm665, %v662, %v664
        %v670 = vmul.f32 %v628, %v662
        %v671 = vmul.f32 %v629, %v666
        %v672 = vmul.f32 %v630, %v664
        %v674 = vlaneseq
        %v675 = vshrl.u32 %v674, 7
        %v676 = vsub.s32 0, %v675
        %v677 = vrot.slane %v416, %v676
        %v678 = vlaneseq
        %v679 = vshrl.u32 %v678, 7
        %v680 = vsub.s32 1, %v679
        %v681 = vrot.slane %v416, %v680
        %682 = vrot.lane.b32.xlu0 %v677, 16
        %v683 = vpop.permute.xlu0 %682
        %684 = vrot.lane.b32.xlu0 %v681, 16
        %v685 = vpop.permute.xlu0 %684
        %vm686 = vcmask 130048
        %v687 = vsel %vm686, %v683, %v685
        %v691 = vmul.f32 %v628, %v683
        %v692 = vmul.f32 %v629, %v687
        %v693 = vmul.f32 %v630, %v685
        %v695 = vlaneseq
        %v696 = vshrl.u32 %v695, 7
        %v697 = vsub.s32 0, %v696
        %v698 = vrot.slane %v417, %v697
        %v699 = vlaneseq
        %v700 = vshrl.u32 %v699, 7
        %v701 = vsub.s32 1, %v700
        %v702 = vrot.slane %v417, %v701
        %703 = vrot.lane.b32.xlu0 %v698, 17
        %v704 = vpop.permute.xlu0 %703
        %705 = vrot.lane.b32.xlu0 %v702, 17
        %v706 = vpop.permute.xlu0 %705
        %vm707 = vcmask 138240
        %v708 = vsel %vm707, %v704, %v706
        %v712 = vmul.f32 %v628, %v704
        %v713 = vmul.f32 %v629, %v708
        %v714 = vmul.f32 %v630, %v706
        %718 = vrot.lane.b32.xlu0 %v570, 127
        %v719 = vpop.permute.xlu0 %718
        %720 = vrot.lane.b32.xlu0 %v571, 127
        %v721 = vpop.permute.xlu0 %720
        %722 = vrot.lane.b32.xlu0 %v572, 127
        %v723 = vpop.permute.xlu0 %722
        %v724 = vsel %vm607, %v719, %v721
        %v725 = vsel %vm607, %v721, %v723
        %732 = vrot.lane.b32.xlu0 %v591, 126
        %v733 = vpop.permute.xlu0 %732
        %734 = vrot.lane.b32.xlu0 %v592, 126
        %v735 = vpop.permute.xlu0 %734
        %736 = vrot.lane.b32.xlu0 %v593, 126
        %v737 = vpop.permute.xlu0 %736
        %vm738 = vcmask 1031168
        %v739 = vsel %vm738, %v733, %v735
        %v740 = vsel %vm738, %v735, %v737
        %747 = vrot.lane.b32.xlu0 %v612, 112
        %v748 = vpop.permute.xlu0 %747
        %749 = vrot.lane.b32.xlu0 %v613, 112
        %v750 = vpop.permute.xlu0 %749
        %751 = vrot.lane.b32.xlu0 %v614, 112
        %v752 = vpop.permute.xlu0 %751
        %v753 = vsel %vm565, %v748, %v750
        %v754 = vsel %vm565, %v750, %v752
        %760 = vrot.lane.b32.xlu0 %v626, 111
        %v761 = vpop.permute.xlu0 %760
        %762 = vrot.lane.b32.xlu0 %v627, 111
        %v763 = vpop.permute.xlu0 %762
        %v764 = vsel %vm544, %v761, %v763
        %771 = vrot.lane.b32.xlu0 %v649, 110
        %v772 = vpop.permute.xlu0 %771
        %773 = vrot.lane.b32.xlu0 %v650, 110
        %v774 = vpop.permute.xlu0 %773
        %775 = vrot.lane.b32.xlu0 %v651, 110
        %v776 = vpop.permute.xlu0 %775
        %vm777 = vcmask 900096
        %v778 = vsel %vm777, %v772, %v774
        %v779 = vsel %vm777, %v774, %v776
        %786 = vrot.lane.b32.xlu0 %v670, 96
        %v787 = vpop.permute.xlu0 %786
        %788 = vrot.lane.b32.xlu0 %v671, 96
        %v789 = vpop.permute.xlu0 %788
        %790 = vrot.lane.b32.xlu0 %v672, 96
        %v791 = vpop.permute.xlu0 %790
        %vm792 = vcmask 785408
        %v793 = vsel %vm792, %v787, %v789
        %v794 = vsel %vm792, %v789, %v791
        %801 = vrot.lane.b32.xlu0 %v691, 95
        %v802 = vpop.permute.xlu0 %801
        %803 = vrot.lane.b32.xlu0 %v692, 95
        %v804 = vpop.permute.xlu0 %803
        %805 = vrot.lane.b32.xlu0 %v693, 95
        %v806 = vpop.permute.xlu0 %805
        %vm807 = vcmask 777216
        %v808 = vsel %vm807, %v802, %v804
        %v809 = vsel %vm807, %v804, %v806
        %816 = vrot.lane.b32.xlu0 %v712, 94
        %v817 = vpop.permute.xlu0 %816
        %818 = vrot.lane.b32.xlu0 %v713, 94
        %v819 = vpop.permute.xlu0 %818
        %820 = vrot.lane.b32.xlu0 %v714, 94
        %v821 = vpop.permute.xlu0 %820
        %vm822 = vcmask 769024
        %v823 = vsel %vm822, %v817, %v819
        %v824 = vsel %vm822, %v819, %v821
        %v828 = vpack.c.bf16 %v724, %v549
        %v829 = vpack.c.bf16 %v725, %v550
        %v830 = vpack.c.bf16 %v723, %v551
        %v831 = vpack.c.bf16 %v753, %v739
        %v832 = vpack.c.bf16 %v754, %v740
        %v833 = vpack.c.bf16 %v752, %v737
        %v834 = vpack.c.bf16 %v772, %v761
        %v835 = vpack.c.bf16 %v778, %v764
        %v836 = vpack.c.bf16 %v779, %v763
        %v837 = vpack.c.bf16 %v802, %v787
        %v838 = vpack.c.bf16 %v808, %v793
        %v839 = vpack.c.bf16 %v809, %v794
        %v840 = vpack.c.bf16 %v817, %v817
        %v841 = vpack.c.bf16 %v823, %v823
        %v842 = vpack.c.bf16 %v824, %v824
        %v843 = vld [vmem:[%s4] sm:$0x3]
        %859 = vrot.lane.b32.xlu0 %v828, 17
        %v860 = vpop.permute.xlu0 %859
        %861 = vrot.lane.b32.xlu0 %v829, 17
        %v862 = vpop.permute.xlu0 %861
        %863 = vrot.lane.b32.xlu0 %v830, 17
        %v864 = vpop.permute.xlu0 %863
        %865 = vrot.lane.b32.xlu0 %v831, 17
        %v866 = vpop.permute.xlu0 %865
        %867 = vrot.lane.b32.xlu0 %v832, 17
        %v868 = vpop.permute.xlu0 %867
        %869 = vrot.lane.b32.xlu0 %v833, 17
        %v870 = vpop.permute.xlu0 %869
        %871 = vrot.lane.b32.xlu0 %v834, 17
        %v872 = vpop.permute.xlu0 %871
        %873 = vrot.lane.b32.xlu0 %v835, 17
        %v874 = vpop.permute.xlu0 %873
        %875 = vrot.lane.b32.xlu0 %v836, 17
        %v876 = vpop.permute.xlu0 %875
        %877 = vrot.lane.b32.xlu0 %v837, 17
        %v878 = vpop.permute.xlu0 %877
        %879 = vrot.lane.b32.xlu0 %v838, 17
        %v880 = vpop.permute.xlu0 %879
        %881 = vrot.lane.b32.xlu0 %v839, 17
        %v882 = vpop.permute.xlu0 %881
        %883 = vrot.lane.b32.xlu0 %v840, 17
        %v884 = vpop.permute.xlu0 %883
        %885 = vrot.lane.b32.xlu0 %v841, 17
        %v886 = vpop.permute.xlu0 %885
        %887 = vrot.lane.b32.xlu0 %v842, 17
        %v888 = vpop.permute.xlu0 %887
        %vm889 = vcmask 138240
        %v890 = vsel %vm889, %v860, %v862
        %v891 = vsel %vm889, %v862, %v864
        %v892 = vsel %vm889, %v866, %v868
        %v893 = vsel %vm889, %v868, %v870
        %v894 = vsel %vm889, %v872, %v874
        %v895 = vsel %vm889, %v874, %v876
        %v896 = vsel %vm889, %v878, %v880
        %v897 = vsel %vm889, %v880, %v882
        %v898 = vsel %vm889, %v884, %v886
        %v899 = vsel %vm889, %v886, %v888
        %vm908 = vcmask 588800
        %v910 = vsel %vm908, %v843, 0
        %vm912 = vcmask 1043456
        %v914 = vsel %vm912, %v898, 0
        %v917 = vsel %vm912, %v899, 0
        %919 = vmatprep.subr.bf16.mxu0 %v891
        %920 = vmatpush1.bf16.msra.mxu0 %v890
        %921 = vmatprep.subr.bf16.mxu0 %v893
        %922 = vmatpush1.bf16.msra.mxu0 %v892
        %923 = vmatprep.subr.bf16.mxu0 %v895
        %924 = vmatpush1.bf16.msra.mxu0 %v894
        %925 = vmatprep.subr.bf16.mxu0 %v897
        %926 = vmatpush1.bf16.msra.mxu0 %v896
        %927 = vmatprep.subr.bf16.mxu0 %v917
        %928 = vmatpush1.bf16.msra.mxu0 %v914
        %929 = vmatprep.subr.bf16.mxu0 0
        %930 = vmatpush1.bf16.msra.mxu0 0
        %931 = vmatprep.subr.bf16.mxu0 0
        %932 = vmatpush1.bf16.msra.mxu0 0
        %933 = vmatprep.subr.bf16.mxu0 0
        %934 = vmatpush1.bf16.msra.mxu0 0
        %935 = vmatprep.subr.bf16.mxu0 0
        %936 = vmatpush1.bf16.msra.mxu0 0
        %937 = vmatprep.subr.bf16.mxu0 0
        %938 = vmatpush1.bf16.msra.mxu0 0
        %939 = vmatprep.subr.bf16.mxu0 0
        %940 = vmatpush1.bf16.msra.mxu0 0
        %941 = vmatprep.subr.bf16.mxu0 0
        %942 = vmatpush1.bf16.msra.mxu0 0
        %943 = vmatprep.subr.bf16.mxu0 0
        %944 = vmatpush1.bf16.msra.mxu0 0
        %945 = vmatprep.subr.bf16.mxu0 0
        %946 = vmatpush1.bf16.msra.mxu0 0
        %947 = vmatprep.subr.bf16.mxu0 0
        %948 = vmatpush1.bf16.msra.mxu0 0
        %949 = vmatprep.subr.bf16.mxu0 0
        %950 = vmatpush1.bf16.msra.mxu0 0
        %951 = vmatprep.mubr.bf16.mxu0 0
        %952 = vmatmul.mubr.bf16.gmra.mrb[0].mxu0 %v910
        %v953 = vpop.f32.mrb[0].mxu0
        %v954 = vadd.f32 0.0, %v953
        %v955 = vpop.f32.mrb[0].mxu0
        %v956 = vadd.f32 0.0, %v955
        %v957 = vpop.f32.mrb[0].mxu0
        %v958 = vpop.f32.mrb[0].mxu0
        %959 = vdwg.mxu0
        %v960 = vld [vmem:[%s5] sm:$0xf]
        %962 = vset.pattern.permute.xlu0 0
        %963 = vperm.xlu0 %962, %v960
        %v964 = vpop.permute.xlu0 %963
        %v966 = vmul.f32 %v954, %v964
        %v967 = vmul.f32 %v956, %v964
        %v968 = vld [vmem:[%s6] sm:$0xf]
        %970 = vset.pattern.permute.xlu0 0
        %971 = vperm.xlu0 %970, %v968
        %v972 = vpop.permute.xlu0 %971
        %v974 = vadd.f32 %v966, %v972
        %v975 = vadd.f32 %v967, %v972
        %v976 = vmax.f32 %v974, 0.0
        %v977 = vmax.f32 %v975, 0.0
        %978 = vst [vmem:[#allocation3] sm:$0xff] 0.0
        %979 = vst [vmem:[#allocation3 + $0x8] sm:$0xff] 0.0
        %v982 = vcombine.low %v976, %v977
        %984 = vst [vmem:[#allocation3 + $0x4] sm:$0xff] %v982
        %v985 = vld [vmem:[#allocation3] sm:$0xff]
        %v986 = vld [vmem:[#allocation3 + $0x8] sm:$0xf]
        %v987 = vcombine.low %v535, %v539
        %988 = vrot.lane.b32.xlu0 %v987, 111
        %v989 = vpop.permute.xlu0 %988
        %v990 = vrot.slane %v989, 4
        %v991 = vsel %vm544, %v990, %v989
        %v994 = vmul.f32 %v985, %v991
        %v995 = vmul.f32 %v986, %v990
        %v996 = vcombine.low %v556, %v560
        %997 = vrot.lane.b32.xlu0 %v996, 112
        %v998 = vpop.permute.xlu0 %997
        %v999 = vrot.slane %v998, 4
        %v1000 = vsel %vm565, %v999, %v998
        %v1003 = vmul.f32 %v985, %v1000
        %v1004 = vmul.f32 %v986, %v999
        %v1005 = vcombine.low %v577, %v581
        %1006 = vrot.lane.b32.xlu0 %v1005, 113
        %v1007 = vpop.permute.xlu0 %1006
        %v1008 = vrot.slane %v1007, 4
        %v1009 = vsel %vm586, %v1008, %v1007
        %v1012 = vmul.f32 %v985, %v1009
        %v1013 = vmul.f32 %v986, %v1008
        %v1014 = vcombine.low %v598, %v602
        %1015 = vrot.lane.b32.xlu0 %v1014, 127
        %v1016 = vpop.permute.xlu0 %1015
        %v1017 = vrot.slane %v1016, 4
        %v1018 = vsel %vm607, %v1017, %v1016
        %v1021 = vmul.f32 %v985, %v1018
        %v1022 = vmul.f32 %v986, %v1017
        %v1023 = vld [vmem:[#allocation3 + $0x4] sm:$0xff]
        %v1024 = vcombine.low %v619, %v623
        %v1026 = vmul.f32 %v1023, %v1024
        %v1027 = vld [vmem:[#allocation3 + $0x4] sm:$0xff]
        %v1028 = vld [vmem:[#allocation3 + $0xc] sm:$0xf]
        %v1029 = vcombine.low %v635, %v639
        %1030 = vrot.lane.b32.xlu0 %v1029, 1
        %v1031 = vpop.permute.xlu0 %1030
        %v1032 = vrot.slane %v1031, 4
        %v1033 = vsel %vm644, %v1032, %v1031
        %v1036 = vmul.f32 %v1027, %v1033
        %v1037 = vmul.f32 %v1028, %v1032
        %v1038 = vcombine.low %v656, %v660
        %1039 = vrot.lane.b32.xlu0 %v1038, 15
        %v1040 = vpop.permute.xlu0 %1039
        %v1041 = vrot.slane %v1040, 4
        %v1042 = vsel %vm665, %v1041, %v1040
        %v1045 = vmul.f32 %v1027, %v1042
        %v1046 = vmul.f32 %v1028, %v1041
        %v1047 = vcombine.low %v677, %v681
        %1048 = vrot.lane.b32.xlu0 %v1047, 16
        %v1049 = vpop.permute.xlu0 %1048
        %v1050 = vrot.slane %v1049, 4
        %v1051 = vsel %vm686, %v1050, %v1049
        %v1054 = vmul.f32 %v1027, %v1051
        %v1055 = vmul.f32 %v1028, %v1050
        %v1056 = vcombine.low %v698, %v702
        %1057 = vrot.lane.b32.xlu0 %v1056, 17
        %v1058 = vpop.permute.xlu0 %1057
        %v1059 = vrot.slane %v1058, 4
        %v1060 = vsel %vm707, %v1059, %v1058
        %v1063 = vmul.f32 %v1027, %v1060
        %v1064 = vmul.f32 %v1028, %v1059
        %v1066 = vcombine.high %v994, %v994
        %v1070 = vcombine.low %v1003, %v1003
        %v1071 = vcombine.low %v1004, %v1004
        %1072 = vrot.lane.b32.xlu0 %v1070, 127
        %v1073 = vpop.permute.xlu0 %1072
        %1074 = vrot.lane.b32.xlu0 %v1003, 127
        %v1075 = vpop.permute.xlu0 %1074
        %1076 = vrot.lane.b32.xlu0 %v1071, 127
        %v1077 = vpop.permute.xlu0 %1076
        %v1078 = vsel %vm607, %v1073, %v1075
        %v1079 = vsel %vm607, %v1075, %v1077
        %v1085 = vcombine.high %v1012, %v1012
        %1086 = vrot.lane.b32.xlu0 %v1012, 126
        %v1087 = vpop.permute.xlu0 %1086
        %1088 = vrot.lane.b32.xlu0 %v1085, 126
        %v1089 = vpop.permute.xlu0 %1088
        %1090 = vrot.lane.b32.xlu0 %v1013, 126
        %v1091 = vpop.permute.xlu0 %1090
        %v1092 = vsel %vm738, %v1087, %v1089
        %v1093 = vsel %vm738, %v1089, %v1091
        %v1099 = vcombine.low %v1021, %v1021
        %v1100 = vcombine.low %v1022, %v1022
        %1101 = vrot.lane.b32.xlu0 %v1099, 112
        %v1102 = vpop.permute.xlu0 %1101
        %1103 = vrot.lane.b32.xlu0 %v1021, 112
        %v1104 = vpop.permute.xlu0 %1103
        %1105 = vrot.lane.b32.xlu0 %v1100, 112
        %v1106 = vpop.permute.xlu0 %1105
        %v1107 = vsel %vm565, %v1102, %v1104
        %v1108 = vsel %vm565, %v1104, %v1106
        %v1113 = vcombine.high %v1026, %v1026
        %1114 = vrot.lane.b32.xlu0 %v1026, 111
        %v1115 = vpop.permute.xlu0 %1114
        %1116 = vrot.lane.b32.xlu0 %v1113, 111
        %v1117 = vpop.permute.xlu0 %1116
        %v1118 = vsel %vm544, %v1115, %v1117
        %v1124 = vcombine.low %v1036, %v1036
        %v1125 = vcombine.low %v1037, %v1037
        %1126 = vrot.lane.b32.xlu0 %v1124, 110
        %v1127 = vpop.permute.xlu0 %1126
        %1128 = vrot.lane.b32.xlu0 %v1036, 110
        %v1129 = vpop.permute.xlu0 %1128
        %1130 = vrot.lane.b32.xlu0 %v1125, 110
        %v1131 = vpop.permute.xlu0 %1130
        %v1132 = vsel %vm777, %v1127, %v1129
        %v1133 = vsel %vm777, %v1129, %v1131
        %v1139 = vcombine.high %v1045, %v1045
        %1140 = vrot.lane.b32.xlu0 %v1045, 96
        %v1141 = vpop.permute.xlu0 %1140
        %1142 = vrot.lane.b32.xlu0 %v1139, 96
        %v1143 = vpop.permute.xlu0 %1142
        %1144 = vrot.lane.b32.xlu0 %v1046, 96
        %v1145 = vpop.permute.xlu0 %1144
        %v1146 = vsel %vm792, %v1141, %v1143
        %v1147 = vsel %vm792, %v1143, %v1145
        %v1153 = vcombine.low %v1054, %v1054
        %v1154 = vcombine.low %v1055, %v1055
        %1155 = vrot.lane.b32.xlu0 %v1153, 95
        %v1156 = vpop.permute.xlu0 %1155
        %1157 = vrot.lane.b32.xlu0 %v1054, 95
        %v1158 = vpop.permute.xlu0 %1157
        %1159 = vrot.lane.b32.xlu0 %v1154, 95
        %v1160 = vpop.permute.xlu0 %1159
        %v1161 = vsel %vm807, %v1156, %v1158
        %v1162 = vsel %vm807, %v1158, %v1160
        %v1168 = vcombine.high %v1063, %v1063
        %1169 = vrot.lane.b32.xlu0 %v1063, 94
        %v1170 = vpop.permute.xlu0 %1169
        %1171 = vrot.lane.b32.xlu0 %v1168, 94
        %v1172 = vpop.permute.xlu0 %1171
        %1173 = vrot.lane.b32.xlu0 %v1064, 94
        %v1174 = vpop.permute.xlu0 %1173
        %v1175 = vsel %vm822, %v1170, %v1172
        %v1176 = vsel %vm822, %v1172, %v1174
        %v1180 = vsel %vm912, %v994, %v1078
        %v1181 = vsel %vm912, %v1066, %v1079
        %v1182 = vsel %vm912, %v995, %v1077
        %v1183 = vsel %vm912, %v1092, %v1107
        %v1184 = vsel %vm912, %v1093, %v1108
        %v1185 = vsel %vm912, %v1091, %v1106
        %v1186 = vsel %vm912, %v1115, %v1127
        %v1187 = vsel %vm912, %v1118, %v1132
        %v1188 = vsel %vm912, %v1117, %v1133
        %v1189 = vsel %vm912, %v1141, %v1156
        %v1190 = vsel %vm912, %v1146, %v1161
        %v1191 = vsel %vm912, %v1147, %v1162
        %v1192 = vpack.c.bf16 %v1183, %v1180
        %v1193 = vpack.c.bf16 %v1184, %v1181
        %v1194 = vpack.c.bf16 %v1185, %v1182
        %v1195 = vpack.c.bf16 %v1189, %v1186
        %v1196 = vpack.c.bf16 %v1190, %v1187
        %v1197 = vpack.c.bf16 %v1191, %v1188
        %v1198 = vpack.c.bf16 %v1170, %v1170
        %v1199 = vpack.c.bf16 %v1175, %v1175
        %v1200 = vpack.c.bf16 %v1176, %v1176
        %v1201 = vld [vmem:[%s7] sm:$0x3]
        %1211 = vrot.lane.b32.xlu0 %v1192, 17
        %v1212 = vpop.permute.xlu0 %1211
        %1213 = vrot.lane.b32.xlu0 %v1193, 17
        %v1214 = vpop.permute.xlu0 %1213
        %1215 = vrot.lane.b32.xlu0 %v1194, 17
        %v1216 = vpop.permute.xlu0 %1215
        %1217 = vrot.lane.b32.xlu0 %v1195, 17
        %v1218 = vpop.permute.xlu0 %1217
        %1219 = vrot.lane.b32.xlu0 %v1196, 17
        %v1220 = vpop.permute.xlu0 %1219
        %1221 = vrot.lane.b32.xlu0 %v1197, 17
        %v1222 = vpop.permute.xlu0 %1221
        %1223 = vrot.lane.b32.xlu0 %v1198, 17
        %v1224 = vpop.permute.xlu0 %1223
        %1225 = vrot.lane.b32.xlu0 %v1199, 17
        %v1226 = vpop.permute.xlu0 %1225
        %1227 = vrot.lane.b32.xlu0 %v1200, 17
        %v1228 = vpop.permute.xlu0 %1227
        %v1229 = vsel %vm889, %v1212, %v1214
        %v1230 = vsel %vm889, %v1214, %v1216
        %v1231 = vsel %vm889, %v1218, %v1220
        %v1232 = vsel %vm889, %v1220, %v1222
        %v1233 = vsel %vm889, %v1224, %v1226
        %v1234 = vsel %vm889, %v1226, %v1228
        %vm1239 = vcmask 293888
        %v1241 = vsel %vm1239, %v1201, 0
        %vm1243 = vcmask 1041408
        %v1245 = vsel %vm1243, %v1233, 0
        %v1248 = vsel %vm1243, %v1234, 0
        %1250 = vmatprep.subr.bf16.mxu0 %v1230
        %1251 = vmatpush1.bf16.msra.mxu0 %v1229
        %1252 = vmatprep.subr.bf16.mxu0 %v1232
        %1253 = vmatpush1.bf16.msra.mxu0 %v1231
        %1254 = vmatprep.subr.bf16.mxu0 %v1248
        %1255 = vmatpush1.bf16.msra.mxu0 %v1245
        %1256 = vmatprep.subr.bf16.mxu0 0
        %1257 = vmatpush1.bf16.msra.mxu0 0
        %1258 = vmatprep.subr.bf16.mxu0 0
        %1259 = vmatpush1.bf16.msra.mxu0 0
        %1260 = vmatprep.subr.bf16.mxu0 0
        %1261 = vmatpush1.bf16.msra.mxu0 0
        %1262 = vmatprep.subr.bf16.mxu0 0
        %1263 = vmatpush1.bf16.msra.mxu0 0
        %1264 = vmatprep.subr.bf16.mxu0 0
        %1265 = vmatpush1.bf16.msra.mxu0 0
        %1266 = vmatprep.subr.bf16.mxu0 0
        %1267 = vmatpush1.bf16.msra.mxu0 0
        %1268 = vmatprep.subr.bf16.mxu0 0
        %1269 = vmatpush1.bf16.msra.mxu0 0
        %1270 = vmatprep.subr.bf16.mxu0 0
        %1271 = vmatpush1.bf16.msra.mxu0 0
        %1272 = vmatprep.subr.bf16.mxu0 0
        %1273 = vmatpush1.bf16.msra.mxu0 0
        %1274 = vmatprep.subr.bf16.mxu0 0
        %1275 = vmatpush1.bf16.msra.mxu0 0
        %1276 = vmatprep.subr.bf16.mxu0 0
        %1277 = vmatpush1.bf16.msra.mxu0 0
        %1278 = vmatprep.subr.bf16.mxu0 0
        %1279 = vmatpush1.bf16.msra.mxu0 0
        %1280 = vmatprep.subr.bf16.mxu0 0
        %1281 = vmatpush1.bf16.msra.mxu0 0
        %1282 = vmatprep.mubr.bf16.mxu0 0
        %1283 = vmatmul.mubr.bf16.gmra.mrb[0].mxu0 %v1241
        %v1284 = vpop.f32.mrb[0].mxu0
        %v1285 = vadd.f32 0.0, %v1284
        %v1286 = vpop.f32.mrb[0].mxu0
        %v1287 = vadd.f32 0.0, %v1286
        %v1288 = vpop.f32.mrb[0].mxu0
        %v1289 = vpop.f32.mrb[0].mxu0
        %1290 = vdwg.mxu0
        %v1291 = vld [vmem:[%s8] sm:$0xf]
        %1293 = vset.pattern.permute.xlu0 0
        %1294 = vperm.xlu0 %1293, %v1291
        %v1295 = vpop.permute.xlu0 %1294
        %v1297 = vmul.f32 %v1285, %v1295
        %v1298 = vmul.f32 %v1287, %v1295
        %v1299 = vld [vmem:[%s9] sm:$0xf]
        %1301 = vset.pattern.permute.xlu0 0
        %1302 = vperm.xlu0 %1301, %v1299
        %v1303 = vpop.permute.xlu0 %1302
        %v1305 = vadd.f32 %v1297, %v1303
        %v1306 = vadd.f32 %v1298, %v1303
        %v1307 = vmax.f32 %v1305, 0.0
        %v1308 = vmax.f32 %v1306, 0.0
        %v1311 = vcombine.low %v1307, %v1308
        %1313 = vst [vmem:[%s403] sm:$0xff] %v1311
        %s1314 = sand.u32 %s256, 1
        %s1315 = scalar_lea.sflag [#allocation6], %s1314
        %s1316 = sand.u32 %s256, 1
        %s1317 = smul.addr %s1316, 8
        %s1318 = scalar_lea.vmem [#allocation9], %s1317
        // Predicated region
        $region69: #{tpu_custom_call.1} parent=59 // pred_check
          %p1319 = pneg %p266
        $region70: #{tpu_custom_call.1} parent=59 // pred_check_branch
          %1321 = sbr.rel (%p1319) target = $region72
        $region71: #{tpu_custom_call.1} parent=59 // pred_region
          %s1323 = ssub.s32 128, 128
          %1324 = vsyncadd %s1315, %s1323
          %s1325 = smul.addr %s28, 2
          %s1326 = smul.addr %s1325, 64
          %s1327 = scalar_lea.hbm %s10, %s1326
          %s1329 = sshll.u32 %s1318, 4
          %s1330 = int_to_ptr.vmem [resolvable:$true] %s1329
          %1332 = dma.vmem_to_hbm [thread:$0]  %s1330, 128, %s1327, %s1315
        $region72: #{tpu_custom_call.1} parent=59 // pred_fallthru
          _
      $region60: #{tpu_custom_call.1} parent=5 // pred_fallthru
        _
      %p1333 = scmp.le.s32.totalorder 2, %s23
      // Predicated region
      $region73: #{tpu_custom_call.1} parent=5 // pred_check
        %p1334 = pneg %p1333
      $region74: #{tpu_custom_call.1} parent=5 // pred_check_branch
        %1336 = sbr.rel (%p1334) target = $region76
      $region75: #{tpu_custom_call.1} parent=5 // pred_region
        %s1337 = ssub.s32 %s23, 2
        // Predicated region
        $region77: #{tpu_custom_call.1} parent=75 // pred_check
          %p1338 = pneg %p272
        $region78: #{tpu_custom_call.1} parent=75 // pred_check_branch
          %1340 = sbr.rel (%p1338) target = $region80
        $region79: #{tpu_custom_call.1} parent=75 // pred_region
          %s1341 = sand.u32 %s257, 1
          %s1342 = scalar_lea.sflag [#allocation6], %s1341
          %s1343 = sand.u32 %s257, 1
          %s1344 = smul.addr %s1343, 8
          %s1345 = scalar_lea.vmem [#allocation9], %s1344
          %1346 = dma.done %s1342, 128
        $region80: #{tpu_custom_call.1} parent=75 // pred_fallthru
          _
      $region76: #{tpu_custom_call.1} parent=5 // pred_fallthru
        _
    $region6: #{tpu_custom_call.1} parent=1 // loop_footer
      %s27 = sadd.s32 1, %s23
    $region7: #{tpu_custom_call.1} parent=1 // loop_footer_branch
      %22 = sbr.rel target = $region3
    $region8: #{tpu_custom_call.1} parent=1 // loop_exit
      _
    %1347 = vsyncpa [#allocation5], 1
    %s1348 = scalar_lea.sflag [#allocation5], 1
    %1349 = vsyncpa %s1348, 1
    %1350 = vsyncpa [#allocation8], 1
    %s1351 = scalar_lea.sflag [#allocation8], 1
    %1352 = vsyncpa %s1351, 1
    %1353 = vsyncpa [#allocation6], 1
    %s1354 = scalar_lea.sflag [#allocation6], 1
    %1355 = vsyncpa %s1354, 1

</llo_original>
